<compile_context>
chip_gen: v7x
topology: tpu7x:2x2x1
jax: 0.10.0
libtpu: 0.0.40
codegen_flags: <defaults>
</compile_context>

<pallas_src>
import numpy as np
import jax
import jax.numpy as jnp
from jax.experimental import pallas as pl
from jax.experimental.pallas import tpu as pltpu

EPS = 1e-5  # nn.BatchNorm2d default eps


def _elu(x):
    # ELU(alpha=1): x if x > 0 else exp(x) - 1   (clamp keeps exp() finite)
    return jnp.where(x > 0, x, jnp.exp(jnp.minimum(x, 0.0)) - 1.0)


def _bn_train(acc, p_ref, g_ref, be_ref):
    """Training-mode BatchNorm on a lane-dense (N*H, W*C) slab.

    One pass over the activation (per-lane sum + sum-of-squares), then a tiny
    matmul with the pre-scaled projector P (P[w*C+c, w'*C+c'] = d_cc'/count)
    folds the W positions on the lane axis into per-channel stats *and*
    broadcasts them back to every lane in one shot.  rsqrt runs on the EUP.
    """
    s = jnp.sum(acc, axis=0, keepdims=True)            # (1, W*C)
    q = jnp.sum(acc * acc, axis=0, keepdims=True)      # (1, W*C)
    mean = jnp.dot(s, p_ref[...], preferred_element_type=jnp.float32)
    ex2 = jnp.dot(q, p_ref[...], preferred_element_type=jnp.float32)
    inv = jax.lax.rsqrt(ex2 - mean * mean + EPS)       # biased batch variance
    return (acc - mean) * (g_ref[...] * inv) + be_ref[...]


def eval_block_kernel(xp_ref, xres_ref, w1_ref, w2_ref,
                      b1_ref, g1_ref, be1_ref,
                      b2_ref, g2_ref, be2_ref,
                      p1_ref, p2_ref,
                      out_ref, hpad_ref):
    N, Hp, WCi = xp_ref.shape          # x with H-halo, lane-dense rows (W*Cin)
    H = Hp - 2
    NH = N * H
    WCh = w1_ref.shape[2]              # W*Chid

    # ---- conv1: 3 block-Toeplitz matmuls (one per vertical tap dy) ----------
    # LHS rows are whole image rows (W*Cin lanes); the Toeplitz weight folds
    # the horizontal taps and W-padding, so the MXU accumulates them and the
    # result is a lane-dense (N*H, W*Chid) slab.
    acc1 = (jnp.dot(xp_ref[:, 0:H, :].reshape(NH, WCi), w1_ref[0],
                    preferred_element_type=jnp.float32)
            + jnp.dot(xp_ref[:, 1:H + 1, :].reshape(NH, WCi), w1_ref[1],
                      preferred_element_type=jnp.float32)
            + jnp.dot(xp_ref[:, 2:H + 2, :].reshape(NH, WCi), w1_ref[2],
                      preferred_element_type=jnp.float32)
            + b1_ref[...])

    # ---- BN1 (batch stats, single pass) + ELU, all lane-dense ---------------
    h1 = _elu(_bn_train(acc1, p1_ref, g1_ref, be1_ref))

    # ---- H-halo scratch for conv2: zero ONLY the two halo rows --------------
    zrow = jnp.zeros((N, 1, WCh), jnp.float32)
    hpad_ref[:, 0:1, :] = zrow
    hpad_ref[:, H + 1:H + 2, :] = zrow
    hpad_ref[:, 1:H + 1, :] = h1.reshape(N, H, WCh)

    # ---- conv2: 3 block-Toeplitz matmuls (center tap reuses h1 directly) ----
    acc2 = (jnp.dot(hpad_ref[:, 0:H, :].reshape(NH, WCh), w2_ref[0],
                    preferred_element_type=jnp.float32)
            + jnp.dot(h1, w2_ref[1], preferred_element_type=jnp.float32)
            + jnp.dot(hpad_ref[:, 2:H + 2, :].reshape(NH, WCh), w2_ref[2],
                      preferred_element_type=jnp.float32)
            + b2_ref[...])

    # ---- BN2 + residual (contiguous unpadded x) + ELU -----------------------
    y = _bn_train(acc2, p2_ref, g2_ref, be2_ref) + xres_ref[...]
    out_ref[...] = _elu(y)


def evaluation_block(x_nchw, w1, b1, g1, be1, w2, b2, g2, be2):
    """x_nchw: (N, Cin, H, W).  w1: (Chid, Cin, 3, 3), w2: (Cout, Chid, 3, 3)."""
    N, Cin, H, W = x_nchw.shape
    Chid, Cout = w1.shape[0], w2.shape[0]
    assert Cout == Cin, "residual add requires output_size == input_size"
    f32 = jnp.float32

    # Lane-dense activation layout: (N, H, W*Cin) rows; pad H-halo only.
    x_nhwc = jnp.transpose(x_nchw, (0, 2, 3, 1)).astype(f32)
    x_rows = x_nhwc.reshape(N, H, W * Cin)
    xp = jnp.pad(x_rows, ((0, 0), (1, 1), (0, 0)))       # H halo (no W padding)
    x_res = x_rows.reshape(N * H, W * Cin)               # contiguous residual

    # Block-Toeplitz conv weights: T folds the horizontal taps (dx) and the
    # implicit zero W-padding into the matmul contraction / output dims.
    T = np.zeros((3, W, W), np.float32)
    for dx in range(3):
        for wo in range(W):
            wi = wo + dx - 1
            if 0 <= wi < W:
                T[dx, wi, wo] = 1.0
    T = jnp.asarray(T)
    w1_hwio = jnp.transpose(w1, (2, 3, 1, 0)).astype(f32)   # (3,3,Cin,Chid)
    w2_hwio = jnp.transpose(w2, (2, 3, 1, 0)).astype(f32)   # (3,3,Chid,Cout)
    w1t = jnp.einsum('ydio,dab->yaibo', w1_hwio, T).reshape(3, W * Cin, W * Chid)
    w2t = jnp.einsum('ydio,dab->yaibo', w2_hwio, T).reshape(3, W * Chid, W * Cout)

    # Pre-scaled per-channel fold/broadcast projector for BN batch statistics.
    cnt = float(N * H * W)
    p1 = jnp.asarray(np.tile(np.eye(Chid, dtype=np.float32), (W, W)) / cnt)
    p2 = jnp.asarray(np.tile(np.eye(Cout, dtype=np.float32), (W, W)) / cnt)

    # Per-channel conv bias / BN affine params tiled to the (w*C + c) lane layout.
    def lane_tile(v, C):
        return jnp.tile(v.astype(f32), W).reshape(1, W * C)

    b1f, g1f, be1f = lane_tile(b1, Chid), lane_tile(g1, Chid), lane_tile(be1, Chid)
    b2f, g2f, be2f = lane_tile(b2, Cout), lane_tile(g2, Cout), lane_tile(be2, Cout)

    vmem = pl.BlockSpec(memory_space=pltpu.MemorySpace.VMEM)
    # TODO(synk): for large N*H this single-invocation design should be gridded
    # over rows (1-row halo) with a two-phase BN (global stats pass + apply) so
    # it fits v7x's 64 MiB VMEM and shards across both TensorCores.
    out2d = pl.pallas_call(
        eval_block_kernel,
        out_shape=jax.ShapeDtypeStruct((N * H, W * Cout), f32),
        in_specs=[vmem] * 12,
        out_specs=vmem,
        scratch_shapes=[pltpu.VMEM((N, H + 2, W * Chid), f32)],
        compiler_params=pltpu.CompilerParams(vmem_limit_bytes=32 * 1024 * 1024),
    )(xp, x_res, w1t, w2t, b1f, g1f, be1f, b2f, g2f, be2f, p1, p2)

    out = out2d.reshape(N, H, W, Cout)
    return jnp.transpose(out, (0, 3, 1, 2))               # back to NCHW


def _reference(x_nchw, w1, b1, g1, be1, w2, b2, g2, be2):
    """Pure-JAX reference of the PyTorch forward (training-mode BN)."""
    x = jnp.transpose(x_nchw, (0, 2, 3, 1))

    def conv(h, w_oihw, b):
        w_hwio = jnp.transpose(w_oihw, (2, 3, 1, 0))
        y = jax.lax.conv_general_dilated(
            h, w_hwio, (1, 1), 'SAME',
            dimension_numbers=('NHWC', 'HWIO', 'NHWC'))
        return y + b

    def bn(y, g, be):
        m = jnp.mean(y, axis=(0, 1, 2), keepdims=True)
        v = jnp.mean((y - m) ** 2, axis=(0, 1, 2), keepdims=True)
        return (y - m) * jax.lax.rsqrt(v + EPS) * g + be

    h = jax.nn.elu(bn(conv(x, w1, b1), g1, be1))
    y = bn(conv(h, w2, b2), g2, be2)
    y = jax.nn.elu(y + x)
    return jnp.transpose(y, (0, 3, 1, 2))


if __name__ == "__main__":
    # Evaluation_Block(input_size=4, hidden_size=8, output_size=4, size=3);
    # input x: (N=2, C=4, H=16, W=16), NCHW.
    N, Cin, H, W = 2, 4, 16, 16
    Chid, Cout = 8, 4

    key = jax.random.PRNGKey(0)
    ks = jax.random.split(key, 9)
    x = jax.random.normal(ks[0], (N, Cin, H, W), jnp.float32)
    w1 = 0.1 * jax.random.normal(ks[1], (Chid, Cin, 3, 3), jnp.float32)
    b1 = 0.1 * jax.random.normal(ks[2], (Chid,), jnp.float32)
    g1 = 1.0 + 0.1 * jax.random.normal(ks[3], (Chid,), jnp.float32)
    be1 = 0.1 * jax.random.normal(ks[4], (Chid,), jnp.float32)
    w2 = 0.1 * jax.random.normal(ks[5], (Cout, Chid, 3, 3), jnp.float32)
    b2 = 0.1 * jax.random.normal(ks[6], (Cout,), jnp.float32)
    g2 = 1.0 + 0.1 * jax.random.normal(ks[7], (Cout,), jnp.float32)
    be2 = 0.1 * jax.random.normal(ks[8], (Cout,), jnp.float32)

    out = evaluation_block(x, w1, b1, g1, be1, w2, b2, g2, be2)
    out = jax.block_until_ready(out)

    ref = jax.block_until_ready(_reference(x, w1, b1, g1, be1, w2, b2, g2, be2))
    assert out.shape == (N, Cout, H, W)
    assert jnp.allclose(out, ref, atol=1e-3, rtol=1e-3), "mismatch vs reference"

    print("KERNEL_OK")
</pallas_src>

<mosaic_0001>
module attributes {stable_mosaic.version = 11 : i64} {
  func.func @eval_block_kernel(%arg0: memref<2x18x64xf32, #tpu.memory_space<vmem>>, %arg1: memref<32x64xf32, #tpu.memory_space<vmem>>, %arg2: memref<3x64x128xf32, #tpu.memory_space<vmem>>, %arg3: memref<3x128x64xf32, #tpu.memory_space<vmem>>, %arg4: memref<1x128xf32, #tpu.memory_space<vmem>>, %arg5: memref<1x128xf32, #tpu.memory_space<vmem>>, %arg6: memref<1x128xf32, #tpu.memory_space<vmem>>, %arg7: memref<1x64xf32, #tpu.memory_space<vmem>>, %arg8: memref<1x64xf32, #tpu.memory_space<vmem>>, %arg9: memref<1x64xf32, #tpu.memory_space<vmem>>, %arg10: memref<128x128xf32, #tpu.memory_space<vmem>>, %arg11: memref<64x64xf32, #tpu.memory_space<vmem>>, %arg12: memref<32x64xf32, #tpu.memory_space<vmem>>, %arg13: memref<2x18x128xf32, #tpu.memory_space<vmem>>) attributes {dimension_semantics = [], scalar_prefetch = 0 : i64, scratch_operands = 1 : i64, tpu.core_type = #tpu.core_type<tc>} {
    %c0 = arith.constant 0 : index
    %c0_0 = arith.constant 0 : index
    %c0_1 = arith.constant 0 : index
    %0 = vector.load %arg0[%c0, %c0_0, %c0_1] : memref<2x18x64xf32, #tpu.memory_space<vmem>>, vector<2x16x64xf32>
    %1 = vector.shape_cast %0 : vector<2x16x64xf32> to vector<32x64xf32>
    %c0_2 = arith.constant 0 : index
    %c0_3 = arith.constant 0 : index
    %c0_4 = arith.constant 0 : index
    %2 = vector.load %arg2[%c0_2, %c0_3, %c0_4] : memref<3x64x128xf32, #tpu.memory_space<vmem>>, vector<1x64x128xf32>
    %3 = vector.shape_cast %2 : vector<1x64x128xf32> to vector<64x128xf32>
    %cst = arith.constant dense<0.000000e+00> : vector<32x128xf32>
    %4 = tpu.matmul %1, %3, %cst {dimension_numbers = #tpu.dot_dimension_numbers<[1], [0], [0], [1], [0, 0, 1, 1], [], []>} : vector<32x64xf32>, vector<64x128xf32>, vector<32x128xf32> -> vector<32x128xf32>
    %c0_5 = arith.constant 0 : index
    %c1 = arith.constant 1 : index
    %c0_6 = arith.constant 0 : index
    %5 = vector.load %arg0[%c0_5, %c1, %c0_6] : memref<2x18x64xf32, #tpu.memory_space<vmem>>, vector<2x16x64xf32>
    %6 = vector.shape_cast %5 : vector<2x16x64xf32> to vector<32x64xf32>
    %c1_7 = arith.constant 1 : index
    %c0_8 = arith.constant 0 : index
    %c0_9 = arith.constant 0 : index
    %7 = vector.load %arg2[%c1_7, %c0_8, %c0_9] : memref<3x64x128xf32, #tpu.memory_space<vmem>>, vector<1x64x128xf32>
    %8 = vector.shape_cast %7 : vector<1x64x128xf32> to vector<64x128xf32>
    %cst_10 = arith.constant dense<0.000000e+00> : vector<32x128xf32>
    %9 = tpu.matmul %6, %8, %cst_10 {dimension_numbers = #tpu.dot_dimension_numbers<[1], [0], [0], [1], [0, 0, 1, 1], [], []>} : vector<32x64xf32>, vector<64x128xf32>, vector<32x128xf32> -> vector<32x128xf32>
    %10 = arith.addf %4, %9 : vector<32x128xf32>
    %c0_11 = arith.constant 0 : index
    %c2 = arith.constant 2 : index
    %c0_12 = arith.constant 0 : index
    %11 = vector.load %arg0[%c0_11, %c2, %c0_12] : memref<2x18x64xf32, #tpu.memory_space<vmem>>, vector<2x16x64xf32>
    %12 = vector.shape_cast %11 : vector<2x16x64xf32> to vector<32x64xf32>
    %c2_13 = arith.constant 2 : index
    %c0_14 = arith.constant 0 : index
    %c0_15 = arith.constant 0 : index
    %13 = vector.load %arg2[%c2_13, %c0_14, %c0_15] : memref<3x64x128xf32, #tpu.memory_space<vmem>>, vector<1x64x128xf32>
    %14 = vector.shape_cast %13 : vector<1x64x128xf32> to vector<64x128xf32>
    %cst_16 = arith.constant dense<0.000000e+00> : vector<32x128xf32>
    %15 = tpu.matmul %12, %14, %cst_16 {dimension_numbers = #tpu.dot_dimension_numbers<[1], [0], [0], [1], [0, 0, 1, 1], [], []>} : vector<32x64xf32>, vector<64x128xf32>, vector<32x128xf32> -> vector<32x128xf32>
    %16 = arith.addf %10, %15 : vector<32x128xf32>
    %c0_17 = arith.constant 0 : index
    %c0_18 = arith.constant 0 : index
    %17 = vector.load %arg4[%c0_17, %c0_18] : memref<1x128xf32, #tpu.memory_space<vmem>>, vector<1x128xf32>
    %18 = vector.broadcast %17 : vector<1x128xf32> to vector<32x128xf32>
    %19 = arith.addf %16, %18 : vector<32x128xf32>
    %cst_19 = arith.constant dense<0.000000e+00> : vector<128xf32>
    %20 = vector.multi_reduction <add>, %19, %cst_19 [0] : vector<32x128xf32> to vector<128xf32>
    %21 = vector.shape_cast %20 : vector<128xf32> to vector<1x128xf32>
    %22 = arith.mulf %19, %19 : vector<32x128xf32>
    %cst_20 = arith.constant dense<0.000000e+00> : vector<128xf32>
    %23 = vector.multi_reduction <add>, %22, %cst_20 [0] : vector<32x128xf32> to vector<128xf32>
    %24 = vector.shape_cast %23 : vector<128xf32> to vector<1x128xf32>
    %c0_21 = arith.constant 0 : index
    %c0_22 = arith.constant 0 : index
    %25 = vector.load %arg10[%c0_21, %c0_22] : memref<128x128xf32, #tpu.memory_space<vmem>>, vector<128x128xf32>
    %cst_23 = arith.constant dense<0.000000e+00> : vector<1x128xf32>
    %26 = tpu.matmul %21, %25, %cst_23 {dimension_numbers = #tpu.dot_dimension_numbers<[1], [0], [0], [1], [0, 0, 1, 1], [], []>} : vector<1x128xf32>, vector<128x128xf32>, vector<1x128xf32> -> vector<1x128xf32>
    %c0_24 = arith.constant 0 : index
    %c0_25 = arith.constant 0 : index
    %27 = vector.load %arg10[%c0_24, %c0_25] : memref<128x128xf32, #tpu.memory_space<vmem>>, vector<128x128xf32>
    %cst_26 = arith.constant dense<0.000000e+00> : vector<1x128xf32>
    %28 = tpu.matmul %24, %27, %cst_26 {dimension_numbers = #tpu.dot_dimension_numbers<[1], [0], [0], [1], [0, 0, 1, 1], [], []>} : vector<1x128xf32>, vector<128x128xf32>, vector<1x128xf32> -> vector<1x128xf32>
    %29 = arith.mulf %26, %26 : vector<1x128xf32>
    %30 = arith.subf %28, %29 : vector<1x128xf32>
    %cst_27 = arith.constant 9.99999974E-6 : f32
    %31 = vector.broadcast %cst_27 : f32 to vector<1x128xf32>
    %32 = arith.addf %30, %31 : vector<1x128xf32>
    %33 = math.rsqrt %32 : vector<1x128xf32>
    %34 = vector.broadcast %26 : vector<1x128xf32> to vector<32x128xf32>
    %35 = arith.subf %19, %34 : vector<32x128xf32>
    %c0_28 = arith.constant 0 : index
    %c0_29 = arith.constant 0 : index
    %36 = vector.load %arg5[%c0_28, %c0_29] : memref<1x128xf32, #tpu.memory_space<vmem>>, vector<1x128xf32>
    %37 = arith.mulf %36, %33 : vector<1x128xf32>
    %38 = vector.broadcast %37 : vector<1x128xf32> to vector<32x128xf32>
    %39 = arith.mulf %35, %38 : vector<32x128xf32>
    %c0_30 = arith.constant 0 : index
    %c0_31 = arith.constant 0 : index
    %40 = vector.load %arg6[%c0_30, %c0_31] : memref<1x128xf32, #tpu.memory_space<vmem>>, vector<1x128xf32>
    %41 = vector.broadcast %40 : vector<1x128xf32> to vector<32x128xf32>
    %42 = arith.addf %39, %41 : vector<32x128xf32>
    %cst_32 = arith.constant 0.000000e+00 : f32
    %43 = vector.broadcast %cst_32 : f32 to vector<32x128xf32>
    %44 = arith.cmpf ogt, %42, %43 : vector<32x128xf32>
    %cst_33 = arith.constant 0.000000e+00 : f32
    %45 = vector.broadcast %cst_33 : f32 to vector<32x128xf32>
    %46 = arith.minimumf %42, %45 : vector<32x128xf32>
    %47 = math.exp %46 : vector<32x128xf32>
    %cst_34 = arith.constant 1.000000e+00 : f32
    %48 = vector.broadcast %cst_34 : f32 to vector<32x128xf32>
    %49 = arith.subf %47, %48 : vector<32x128xf32>
    %50 = arith.select %44, %42, %49 : vector<32x128xi1>, vector<32x128xf32>
    %cst_35 = arith.constant 0.000000e+00 : f32
    %51 = vector.broadcast %cst_35 : f32 to vector<2x1x128xf32>
    %c0_36 = arith.constant 0 : index
    %c0_37 = arith.constant 0 : index
    %c0_38 = arith.constant 0 : index
    %52 = vector.load %arg13[%c0_36, %c0_37, %c0_38] : memref<2x18x128xf32, #tpu.memory_space<vmem>>, vector<2x1x128xf32>
    tpu.vector_store %arg13[%c0_36, %c0_37, %c0_38], %51 {strides = array<i32>} : memref<2x18x128xf32, #tpu.memory_space<vmem>>, vector<2x1x128xf32>,
    %c0_39 = arith.constant 0 : index
    %c17 = arith.constant 17 : index
    %c0_40 = arith.constant 0 : index
    %53 = vector.load %arg13[%c0_39, %c17, %c0_40] : memref<2x18x128xf32, #tpu.memory_space<vmem>>, vector<2x1x128xf32>
    tpu.vector_store %arg13[%c0_39, %c17, %c0_40], %51 {strides = array<i32>} : memref<2x18x128xf32, #tpu.memory_space<vmem>>, vector<2x1x128xf32>,
    %54 = vector.shape_cast %50 : vector<32x128xf32> to vector<2x16x128xf32>
    %c0_41 = arith.constant 0 : index
    %c1_42 = arith.constant 1 : index
    %c0_43 = arith.constant 0 : index
    %55 = vector.load %arg13[%c0_41, %c1_42, %c0_43] : memref<2x18x128xf32, #tpu.memory_space<vmem>>, vector<2x16x128xf32>
    tpu.vector_store %arg13[%c0_41, %c1_42, %c0_43], %54 {strides = array<i32>} : memref<2x18x128xf32, #tpu.memory_space<vmem>>, vector<2x16x128xf32>,
    %c0_44 = arith.constant 0 : index
    %c0_45 = arith.constant 0 : index
    %c0_46 = arith.constant 0 : index
    %56 = vector.load %arg13[%c0_44, %c0_45, %c0_46] : memref<2x18x128xf32, #tpu.memory_space<vmem>>, vector<2x16x128xf32>
    %57 = vector.shape_cast %56 : vector<2x16x128xf32> to vector<32x128xf32>
    %c0_47 = arith.constant 0 : index
    %c0_48 = arith.constant 0 : index
    %c0_49 = arith.constant 0 : index
    %58 = vector.load %arg3[%c0_47, %c0_48, %c0_49] : memref<3x128x64xf32, #tpu.memory_space<vmem>>, vector<1x128x64xf32>
    %59 = vector.shape_cast %58 : vector<1x128x64xf32> to vector<128x64xf32>
    %cst_50 = arith.constant dense<0.000000e+00> : vector<32x64xf32>
    %60 = tpu.matmul %57, %59, %cst_50 {dimension_numbers = #tpu.dot_dimension_numbers<[1], [0], [0], [1], [0, 0, 1, 1], [], []>} : vector<32x128xf32>, vector<128x64xf32>, vector<32x64xf32> -> vector<32x64xf32>
    %c1_51 = arith.constant 1 : index
    %c0_52 = arith.constant 0 : index
    %c0_53 = arith.constant 0 : index
    %61 = vector.load %arg3[%c1_51, %c0_52, %c0_53] : memref<3x128x64xf32, #tpu.memory_space<vmem>>, vector<1x128x64xf32>
    %62 = vector.shape_cast %61 : vector<1x128x64xf32> to vector<128x64xf32>
    %cst_54 = arith.constant dense<0.000000e+00> : vector<32x64xf32>
    %63 = tpu.matmul %50, %62, %cst_54 {dimension_numbers = #tpu.dot_dimension_numbers<[1], [0], [0], [1], [0, 0, 1, 1], [], []>} : vector<32x128xf32>, vector<128x64xf32>, vector<32x64xf32> -> vector<32x64xf32>
    %64 = arith.addf %60, %63 : vector<32x64xf32>
    %c0_55 = arith.constant 0 : index
    %c2_56 = arith.constant 2 : index
    %c0_57 = arith.constant 0 : index
    %65 = vector.load %arg13[%c0_55, %c2_56, %c0_57] : memref<2x18x128xf32, #tpu.memory_space<vmem>>, vector<2x16x128xf32>
    %66 = vector.shape_cast %65 : vector<2x16x128xf32> to vector<32x128xf32>
    %c2_58 = arith.constant 2 : index
    %c0_59 = arith.constant 0 : index
    %c0_60 = arith.constant 0 : index
    %67 = vector.load %arg3[%c2_58, %c0_59, %c0_60] : memref<3x128x64xf32, #tpu.memory_space<vmem>>, vector<1x128x64xf32>
    %68 = vector.shape_cast %67 : vector<1x128x64xf32> to vector<128x64xf32>
    %cst_61 = arith.constant dense<0.000000e+00> : vector<32x64xf32>
    %69 = tpu.matmul %66, %68, %cst_61 {dimension_numbers = #tpu.dot_dimension_numbers<[1], [0], [0], [1], [0, 0, 1, 1], [], []>} : vector<32x128xf32>, vector<128x64xf32>, vector<32x64xf32> -> vector<32x64xf32>
    %70 = arith.addf %64, %69 : vector<32x64xf32>
    %c0_62 = arith.constant 0 : index
    %c0_63 = arith.constant 0 : index
    %71 = vector.load %arg7[%c0_62, %c0_63] : memref<1x64xf32, #tpu.memory_space<vmem>>, vector<1x64xf32>
    %72 = vector.broadcast %71 : vector<1x64xf32> to vector<32x64xf32>
    %73 = arith.addf %70, %72 : vector<32x64xf32>
    %cst_64 = arith.constant dense<0.000000e+00> : vector<64xf32>
    %74 = vector.multi_reduction <add>, %73, %cst_64 [0] : vector<32x64xf32> to vector<64xf32>
    %75 = vector.shape_cast %74 : vector<64xf32> to vector<1x64xf32>
    %76 = arith.mulf %73, %73 : vector<32x64xf32>
    %cst_65 = arith.constant dense<0.000000e+00> : vector<64xf32>
    %77 = vector.multi_reduction <add>, %76, %cst_65 [0] : vector<32x64xf32> to vector<64xf32>
    %78 = vector.shape_cast %77 : vector<64xf32> to vector<1x64xf32>
    %c0_66 = arith.constant 0 : index
    %c0_67 = arith.constant 0 : index
    %79 = vector.load %arg11[%c0_66, %c0_67] : memref<64x64xf32, #tpu.memory_space<vmem>>, vector<64x64xf32>
    %cst_68 = arith.constant dense<0.000000e+00> : vector<1x64xf32>
    %80 = tpu.matmul %75, %79, %cst_68 {dimension_numbers = #tpu.dot_dimension_numbers<[1], [0], [0], [1], [0, 0, 1, 1], [], []>} : vector<1x64xf32>, vector<64x64xf32>, vector<1x64xf32> -> vector<1x64xf32>
    %c0_69 = arith.constant 0 : index
    %c0_70 = arith.constant 0 : index
    %81 = vector.load %arg11[%c0_69, %c0_70] : memref<64x64xf32, #tpu.memory_space<vmem>>, vector<64x64xf32>
    %cst_71 = arith.constant dense<0.000000e+00> : vector<1x64xf32>
    %82 = tpu.matmul %78, %81, %cst_71 {dimension_numbers = #tpu.dot_dimension_numbers<[1], [0], [0], [1], [0, 0, 1, 1], [], []>} : vector<1x64xf32>, vector<64x64xf32>, vector<1x64xf32> -> vector<1x64xf32>
    %83 = arith.mulf %80, %80 : vector<1x64xf32>
    %84 = arith.subf %82, %83 : vector<1x64xf32>
    %cst_72 = arith.constant 9.99999974E-6 : f32
    %85 = vector.broadcast %cst_72 : f32 to vector<1x64xf32>
    %86 = arith.addf %84, %85 : vector<1x64xf32>
    %87 = math.rsqrt %86 : vector<1x64xf32>
    %88 = vector.broadcast %80 : vector<1x64xf32> to vector<32x64xf32>
    %89 = arith.subf %73, %88 : vector<32x64xf32>
    %c0_73 = arith.constant 0 : index
    %c0_74 = arith.constant 0 : index
    %90 = vector.load %arg8[%c0_73, %c0_74] : memref<1x64xf32, #tpu.memory_space<vmem>>, vector<1x64xf32>
    %91 = arith.mulf %90, %87 : vector<1x64xf32>
    %92 = vector.broadcast %91 : vector<1x64xf32> to vector<32x64xf32>
    %93 = arith.mulf %89, %92 : vector<32x64xf32>
    %c0_75 = arith.constant 0 : index
    %c0_76 = arith.constant 0 : index
    %94 = vector.load %arg9[%c0_75, %c0_76] : memref<1x64xf32, #tpu.memory_space<vmem>>, vector<1x64xf32>
    %95 = vector.broadcast %94 : vector<1x64xf32> to vector<32x64xf32>
    %96 = arith.addf %93, %95 : vector<32x64xf32>
    %c0_77 = arith.constant 0 : index
    %c0_78 = arith.constant 0 : index
    %97 = vector.load %arg1[%c0_77, %c0_78] : memref<32x64xf32, #tpu.memory_space<vmem>>, vector<32x64xf32>
    %98 = arith.addf %96, %97 : vector<32x64xf32>
    %cst_79 = arith.constant 0.000000e+00 : f32
    %99 = vector.broadcast %cst_79 : f32 to vector<32x64xf32>
    %100 = arith.cmpf ogt, %98, %99 : vector<32x64xf32>
    %cst_80 = arith.constant 0.000000e+00 : f32
    %101 = vector.broadcast %cst_80 : f32 to vector<32x64xf32>
    %102 = arith.minimumf %98, %101 : vector<32x64xf32>
    %103 = math.exp %102 : vector<32x64xf32>
    %cst_81 = arith.constant 1.000000e+00 : f32
    %104 = vector.broadcast %cst_81 : f32 to vector<32x64xf32>
    %105 = arith.subf %103, %104 : vector<32x64xf32>
    %106 = arith.select %100, %98, %105 : vector<32x64xi1>, vector<32x64xf32>
    %c0_82 = arith.constant 0 : index
    %c0_83 = arith.constant 0 : index
    %107 = vector.load %arg12[%c0_82, %c0_83] : memref<32x64xf32, #tpu.memory_space<vmem>>, vector<32x64xf32>
    tpu.vector_store %arg12[%c0_82, %c0_83], %106 {strides = array<i32>} : memref<32x64xf32, #tpu.memory_space<vmem>>, vector<32x64xf32>,
    return
  }
}

</mosaic_0001>

<llo_original>
// kernel: tpu_custom_call.1
$region0: #{tpu_custom_call.1}
  #allocation0 [shape = 'u32[]', space=smem, size = 0x4, offset = 0x4, fixed_abs, tag = 'smem constant byte address 0x4 - core index']
  #allocation1 [shape = 'u32[144,128]{1,0:T(1,128)}', space=vmem, size = 0x12000, scoped, tag = 'internal scratch']
  #allocation2 [shape = 'f32[2,18,128]{2,1,0:T(8,128)}', space=vmem, size = 0x6000, scoped, tag = 'scratch operand']
  %s0 = inlined_call_operand.vmem [shape: f32[2,18,64], index: 0, kind: input, shape index: {}]
  %s1 = inlined_call_operand.vmem [shape: f32[32,64], index: 1, kind: input, shape index: {}]
  %s2 = inlined_call_operand.vmem [shape: f32[3,64,128], index: 2, kind: input, shape index: {}]
  %s3 = inlined_call_operand.vmem [shape: f32[3,128,64], index: 3, kind: input, shape index: {}]
  %s4 = inlined_call_operand.vmem [shape: f32[1,128], index: 4, kind: input, shape index: {}]
  %s5 = inlined_call_operand.vmem [shape: f32[1,128], index: 5, kind: input, shape index: {}]
  %s6 = inlined_call_operand.vmem [shape: f32[1,128], index: 6, kind: input, shape index: {}]
  %s7 = inlined_call_operand.vmem [shape: f32[1,64], index: 7, kind: input, shape index: {}]
  %s8 = inlined_call_operand.vmem [shape: f32[1,64], index: 8, kind: input, shape index: {}]
  %s9 = inlined_call_operand.vmem [shape: f32[1,64], index: 9, kind: input, shape index: {}]
  %s10 = inlined_call_operand.vmem [shape: f32[128,128], index: 10, kind: input, shape index: {}]
  %s11 = inlined_call_operand.vmem [shape: f32[64,64], index: 11, kind: input, shape index: {}]
  %s12 = inlined_call_operand.hbm [shape: f32[32,64], index: 12, kind: output, shape index: {}]
  %s13 = sld [smem:[#allocation0]]
  $region58: #{tpu_custom_call.1} parent=0
    _
  %s15 = ssub.s32 1, %s13
  %s16 = scalar_select 0, %s15, %s13
  $region1: #{tpu_custom_call.1} parent=0
    #allocation3 [shape = 'u8[16384]{0}', space=vmem, size = 0x4000, scoped, tag = 'output window, operand 0, single buffered']
    #allocation4 [shape = 's32[1]{0}', space=sflag, size = 0x4, scoped, tag = 'scoped memory for tpu_custom_call.1']
    %17 = vsyncpa [#allocation4], 0
    // Predicated region
    $region2: #{tpu_custom_call.1} parent=1 // pred_check
      _
    $region3: #{tpu_custom_call.1} parent=1 // pred_check_branch
      %19 = sbr.rel (0) target = $region5
    $region4: #{tpu_custom_call.1} parent=1 // pred_region
      _
    $region5: #{tpu_custom_call.1} parent=1 // pred_fallthru
      _
    // Predicated region
    $region6: #{tpu_custom_call.1} parent=1 // pred_check
      _
    $region7: #{tpu_custom_call.1} parent=1 // pred_check_branch
      %21 = sbr.rel (0) target = $region9
    $region8: #{tpu_custom_call.1} parent=1 // pred_region
      _
    $region9: #{tpu_custom_call.1} parent=1 // pred_fallthru
      _
    // Predicated region
    $region10: #{tpu_custom_call.1} parent=1 // pred_check
      _
    $region11: #{tpu_custom_call.1} parent=1 // pred_check_branch
      %23 = sbr.rel (0) target = $region13
    $region12: #{tpu_custom_call.1} parent=1 // pred_region
      _
    $region13: #{tpu_custom_call.1} parent=1 // pred_fallthru
      _
    // Predicated region
    $region14: #{tpu_custom_call.1} parent=1 // pred_check
      _
    $region15: #{tpu_custom_call.1} parent=1 // pred_check_branch
      %25 = sbr.rel (0) target = $region17
    $region16: #{tpu_custom_call.1} parent=1 // pred_region
      _
    $region17: #{tpu_custom_call.1} parent=1 // pred_fallthru
      _
    // Predicated region
    $region18: #{tpu_custom_call.1} parent=1 // pred_check
      _
    $region19: #{tpu_custom_call.1} parent=1 // pred_check_branch
      %27 = sbr.rel (0) target = $region21
    $region20: #{tpu_custom_call.1} parent=1 // pred_region
      _
    $region21: #{tpu_custom_call.1} parent=1 // pred_fallthru
      _
    // Predicated region
    $region22: #{tpu_custom_call.1} parent=1 // pred_check
      _
    $region23: #{tpu_custom_call.1} parent=1 // pred_check_branch
      %29 = sbr.rel (0) target = $region25
    $region24: #{tpu_custom_call.1} parent=1 // pred_region
      _
    $region25: #{tpu_custom_call.1} parent=1 // pred_fallthru
      _
    // Predicated region
    $region26: #{tpu_custom_call.1} parent=1 // pred_check
      _
    $region27: #{tpu_custom_call.1} parent=1 // pred_check_branch
      %31 = sbr.rel (0) target = $region29
    $region28: #{tpu_custom_call.1} parent=1 // pred_region
      _
    $region29: #{tpu_custom_call.1} parent=1 // pred_fallthru
      _
    // Predicated region
    $region30: #{tpu_custom_call.1} parent=1 // pred_check
      _
    $region31: #{tpu_custom_call.1} parent=1 // pred_check_branch
      %33 = sbr.rel (0) target = $region33
    $region32: #{tpu_custom_call.1} parent=1 // pred_region
      _
    $region33: #{tpu_custom_call.1} parent=1 // pred_fallthru
      _
    // Predicated region
    $region34: #{tpu_custom_call.1} parent=1 // pred_check
      _
    $region35: #{tpu_custom_call.1} parent=1 // pred_check_branch
      %35 = sbr.rel (0) target = $region37
    $region36: #{tpu_custom_call.1} parent=1 // pred_region
      _
    $region37: #{tpu_custom_call.1} parent=1 // pred_fallthru
      _
    // Predicated region
    $region38: #{tpu_custom_call.1} parent=1 // pred_check
      _
    $region39: #{tpu_custom_call.1} parent=1 // pred_check_branch
      %37 = sbr.rel (0) target = $region41
    $region40: #{tpu_custom_call.1} parent=1 // pred_region
      _
    $region41: #{tpu_custom_call.1} parent=1 // pred_fallthru
      _
    // Predicated region
    $region42: #{tpu_custom_call.1} parent=1 // pred_check
      _
    $region43: #{tpu_custom_call.1} parent=1 // pred_check_branch
      %39 = sbr.rel (0) target = $region45
    $region44: #{tpu_custom_call.1} parent=1 // pred_region
      _
    $region45: #{tpu_custom_call.1} parent=1 // pred_fallthru
      _
    // Predicated region
    $region46: #{tpu_custom_call.1} parent=1 // pred_check
      _
    $region47: #{tpu_custom_call.1} parent=1 // pred_check_branch
      %41 = sbr.rel (0) target = $region49
    $region48: #{tpu_custom_call.1} parent=1 // pred_region
      _
    $region49: #{tpu_custom_call.1} parent=1 // pred_fallthru
      _
    %v42 = vld [vmem:[%s0] sm:$0xff]
    %v43 = vld [vmem:[%s0 + $0x8] sm:$0xff]
    %v44 = vld [vmem:[%s0 + $0x18] sm:$0xff]
    %v45 = vld [vmem:[%s0 + $0x20] sm:$0xff]
    %v46 = vld [vmem:[%s2] sm:$0xff]
    %v47 = vld [vmem:[%s2 + $0x8] sm:$0xff]
    %v48 = vld [vmem:[%s2 + $0x10] sm:$0xff]
    %v49 = vld [vmem:[%s2 + $0x18] sm:$0xff]
    %v50 = vld [vmem:[%s2 + $0x20] sm:$0xff]
    %v51 = vld [vmem:[%s2 + $0x28] sm:$0xff]
    %v52 = vld [vmem:[%s2 + $0x30] sm:$0xff]
    %v53 = vld [vmem:[%s2 + $0x38] sm:$0xff]
    %v54 = vld [vmem:[%s0 + $0x1] sm:$0xff]
    %v55 = vld [vmem:[%s0 + $0x9] sm:$0xff]
    %v56 = vld [vmem:[%s0 + $0x19] sm:$0xff]
    %v57 = vld [vmem:[%s0 + $0x21] sm:$0xff]
    %s58 = scalar_lea.vmem %s2, 64
    %v59 = vld [vmem:[%s58] sm:$0xff]
    %v60 = vld [vmem:[%s58 + $0x8] sm:$0xff]
    %v61 = vld [vmem:[%s58 + $0x10] sm:$0xff]
    %v62 = vld [vmem:[%s58 + $0x18] sm:$0xff]
    %v63 = vld [vmem:[%s58 + $0x20] sm:$0xff]
    %v64 = vld [vmem:[%s58 + $0x28] sm:$0xff]
    %v65 = vld [vmem:[%s58 + $0x30] sm:$0xff]
    %v66 = vld [vmem:[%s58 + $0x38] sm:$0xff]
    %vm67 = vcmask 523264
    %v69 = vsel %vm67, %v54, 0
    %v72 = vsel %vm67, %v55, 0
    %v75 = vsel %vm67, %v56, 0
    %v78 = vsel %vm67, %v57, 0
    %80 = vmatprep.subr.mxu0 0.0
    %81 = vmatpush1.msra.mxu0 %v59
    %82 = vmatprep.subr.mxu0 0.0
    %83 = vmatpush1.msra.mxu0 %v60
    %84 = vmatprep.subr.mxu0 0.0
    %85 = vmatpush1.msra.mxu0 %v61
    %86 = vmatprep.subr.mxu0 0.0
    %87 = vmatpush1.msra.mxu0 %v62
    %88 = vmatprep.subr.mxu0 0.0
    %89 = vmatpush1.msra.mxu0 %v63
    %90 = vmatprep.subr.mxu0 0.0
    %91 = vmatpush1.msra.mxu0 %v64
    %92 = vmatprep.subr.mxu0 0.0
    %93 = vmatpush1.msra.mxu0 %v65
    %94 = vmatprep.subr.mxu0 0.0
    %95 = vmatpush1.msra.mxu0 %v66
    %96 = vmatprep.subr.mxu0 0.0
    %97 = vmatpush1.msra.mxu0 0.0
    %98 = vmatprep.subr.mxu0 0.0
    %99 = vmatpush1.msra.mxu0 0.0
    %100 = vmatprep.subr.mxu0 0.0
    %101 = vmatpush1.msra.mxu0 0.0
    %102 = vmatprep.subr.mxu0 0.0
    %103 = vmatpush1.msra.mxu0 0.0
    %104 = vmatprep.subr.mxu0 0.0
    %105 = vmatpush1.msra.mxu0 0.0
    %106 = vmatprep.subr.mxu0 0.0
    %107 = vmatpush1.msra.mxu0 0.0
    %108 = vmatprep.subr.mxu0 0.0
    %109 = vmatpush1.msra.mxu0 0.0
    %110 = vmatprep.subr.mxu0 0.0
    %111 = vmatpush1.msra.mxu0 0.0
    %112 = vmatprep.subr.mxu0 0.0
    %113 = vmatpush1.msra.mxu0 0.0
    %114 = vmatprep.subr.mxu0 0.0
    %115 = vmatpush1.msra.mxu0 0.0
    %116 = vmatprep.subr.mxu0 0.0
    %117 = vmatpush1.msra.mxu0 0.0
    %118 = vmatprep.subr.mxu0 0.0
    %119 = vmatpush1.msra.mxu0 0.0
    %120 = vmatprep.subr.mxu0 0.0
    %121 = vmatpush1.msra.mxu0 0.0
    %122 = vmatprep.subr.mxu0 0.0
    %123 = vmatpush1.msra.mxu0 0.0
    %124 = vmatprep.subr.mxu0 0.0
    %125 = vmatpush1.msra.mxu0 0.0
    %126 = vmatprep.subr.mxu0 0.0
    %127 = vmatpush1.msra.mxu0 0.0
    %128 = vmatprep.subr.mxu0 0.0
    %129 = vmatpush1.msra.mxu0 0.0
    %130 = vmatprep.subr.mxu0 0.0
    %131 = vmatpush1.msra.mxu0 0.0
    %132 = vmatprep.subr.mxu0 0.0
    %133 = vmatpush1.msra.mxu0 0.0
    %134 = vmatprep.subr.mxu0 0.0
    %135 = vmatpush1.msra.mxu0 0.0
    %136 = vmatprep.subr.mxu0 0.0
    %137 = vmatpush1.msra.mxu0 0.0
    %138 = vmatprep.subr.mxu0 0.0
    %139 = vmatpush1.msra.mxu0 0.0
    %140 = vmatprep.subr.mxu0 0.0
    %141 = vmatpush1.msra.mxu0 0.0
    %142 = vmatprep.subr.mxu0 0.0
    %143 = vmatpush1.msra.mxu0 0.0
    %144 = vmatprep.mubr.f32.mxu0 0.0
    %145 = vmatmul.mubr.f32.gmra.mrb[0].mxu0 %v69
    %v146 = vpop.f32.mrb[0].mxu0
    %v147 = vadd.f32 0.0, %v146
    %v148 = vpop.f32.mrb[0].mxu0
    %149 = vmatprep.mubr.f32.mxu0 0.0
    %150 = vmatmul.mubr.f32.gmra.mrb[0].mxu0 %v72
    %v151 = vpop.f32.mrb[0].mxu0
    %v152 = vadd.f32 0.0, %v151
    %v153 = vpop.f32.mrb[0].mxu0
    %154 = vmatprep.mubr.f32.mxu0 0.0
    %155 = vmatmul.mubr.f32.gmra.mrb[0].mxu0 %v75
    %v156 = vpop.f32.mrb[0].mxu0
    %v157 = vadd.f32 0.0, %v156
    %v158 = vpop.f32.mrb[0].mxu0
    %159 = vmatprep.mubr.f32.mxu0 0.0
    %160 = vmatmul.mubr.f32.gmra.mrb[0].mxu0 %v78
    %v161 = vpop.f32.mrb[0].mxu0
    %v162 = vadd.f32 0.0, %v161
    %v163 = vpop.f32.mrb[0].mxu0
    %164 = vdwg.mxu0
    %v166 = vsel %vm67, %v42, 0
    %v169 = vsel %vm67, %v43, 0
    %v172 = vsel %vm67, %v44, 0
    %v175 = vsel %vm67, %v45, 0
    %177 = vmatprep.subr.mxu0 0.0
    %178 = vmatpush1.msra.mxu0 %v46
    %179 = vmatprep.subr.mxu0 0.0
    %180 = vmatpush1.msra.mxu0 %v47
    %181 = vmatprep.subr.mxu0 0.0
    %182 = vmatpush1.msra.mxu0 %v48
    %183 = vmatprep.subr.mxu0 0.0
    %184 = vmatpush1.msra.mxu0 %v49
    %185 = vmatprep.subr.mxu0 0.0
    %186 = vmatpush1.msra.mxu0 %v50
    %187 = vmatprep.subr.mxu0 0.0
    %188 = vmatpush1.msra.mxu0 %v51
    %189 = vmatprep.subr.mxu0 0.0
    %190 = vmatpush1.msra.mxu0 %v52
    %191 = vmatprep.subr.mxu0 0.0
    %192 = vmatpush1.msra.mxu0 %v53
    %193 = vmatprep.subr.mxu0 0.0
    %194 = vmatpush1.msra.mxu0 0.0
    %195 = vmatprep.subr.mxu0 0.0
    %196 = vmatpush1.msra.mxu0 0.0
    %197 = vmatprep.subr.mxu0 0.0
    %198 = vmatpush1.msra.mxu0 0.0
    %199 = vmatprep.subr.mxu0 0.0
    %200 = vmatpush1.msra.mxu0 0.0
    %201 = vmatprep.subr.mxu0 0.0
    %202 = vmatpush1.msra.mxu0 0.0
    %203 = vmatprep.subr.mxu0 0.0
    %204 = vmatpush1.msra.mxu0 0.0
    %205 = vmatprep.subr.mxu0 0.0
    %206 = vmatpush1.msra.mxu0 0.0
    %207 = vmatprep.subr.mxu0 0.0
    %208 = vmatpush1.msra.mxu0 0.0
    %209 = vmatprep.subr.mxu0 0.0
    %210 = vmatpush1.msra.mxu0 0.0
    %211 = vmatprep.subr.mxu0 0.0
    %212 = vmatpush1.msra.mxu0 0.0
    %213 = vmatprep.subr.mxu0 0.0
    %214 = vmatpush1.msra.mxu0 0.0
    %215 = vmatprep.subr.mxu0 0.0
    %216 = vmatpush1.msra.mxu0 0.0
    %217 = vmatprep.subr.mxu0 0.0
    %218 = vmatpush1.msra.mxu0 0.0
    %219 = vmatprep.subr.mxu0 0.0
    %220 = vmatpush1.msra.mxu0 0.0
    %221 = vmatprep.subr.mxu0 0.0
    %222 = vmatpush1.msra.mxu0 0.0
    %223 = vmatprep.subr.mxu0 0.0
    %224 = vmatpush1.msra.mxu0 0.0
    %225 = vmatprep.subr.mxu0 0.0
    %226 = vmatpush1.msra.mxu0 0.0
    %227 = vmatprep.subr.mxu0 0.0
    %228 = vmatpush1.msra.mxu0 0.0
    %229 = vmatprep.subr.mxu0 0.0
    %230 = vmatpush1.msra.mxu0 0.0
    %231 = vmatprep.subr.mxu0 0.0
    %232 = vmatpush1.msra.mxu0 0.0
    %233 = vmatprep.subr.mxu0 0.0
    %234 = vmatpush1.msra.mxu0 0.0
    %235 = vmatprep.subr.mxu0 0.0
    %236 = vmatpush1.msra.mxu0 0.0
    %237 = vmatprep.subr.mxu0 0.0
    %238 = vmatpush1.msra.mxu0 0.0
    %239 = vmatprep.subr.mxu0 0.0
    %240 = vmatpush1.msra.mxu0 0.0
    %241 = vmatprep.mubr.f32.mxu0 0.0
    %242 = vmatmul.mubr.f32.gmra.mrb[0].mxu0 %v166
    %v243 = vpop.f32.mrb[0].mxu0
    %v244 = vadd.f32 %v147, %v243
    %v245 = vpop.f32.mrb[0].mxu0
    %246 = vmatprep.mubr.f32.mxu0 0.0
    %247 = vmatmul.mubr.f32.gmra.mrb[0].mxu0 %v169
    %v248 = vpop.f32.mrb[0].mxu0
    %v249 = vadd.f32 %v152, %v248
    %v250 = vpop.f32.mrb[0].mxu0
    %251 = vmatprep.mubr.f32.mxu0 0.0
    %252 = vmatmul.mubr.f32.gmra.mrb[0].mxu0 %v172
    %v253 = vpop.f32.mrb[0].mxu0
    %v254 = vadd.f32 %v157, %v253
    %v255 = vpop.f32.mrb[0].mxu0
    %256 = vmatprep.mubr.f32.mxu0 0.0
    %257 = vmatmul.mubr.f32.gmra.mrb[0].mxu0 %v175
    %v258 = vpop.f32.mrb[0].mxu0
    %v259 = vadd.f32 %v162, %v258
    %v260 = vpop.f32.mrb[0].mxu0
    %261 = vdwg.mxu0
    %v262 = vld [vmem:[%s0 + $0x2] sm:$0xff]
    %v263 = vld [vmem:[%s0 + $0xa] sm:$0xff]
    %v264 = vld [vmem:[%s0 + $0x1a] sm:$0xff]
    %v265 = vld [vmem:[%s0 + $0x22] sm:$0xff]
    %s266 = scalar_lea.vmem %s2, 128
    %v267 = vld [vmem:[%s266] sm:$0xff]
    %v268 = vld [vmem:[%s266 + $0x8] sm:$0xff]
    %v269 = vld [vmem:[%s266 + $0x10] sm:$0xff]
    %v270 = vld [vmem:[%s266 + $0x18] sm:$0xff]
    %v271 = vld [vmem:[%s266 + $0x20] sm:$0xff]
    %v272 = vld [vmem:[%s266 + $0x28] sm:$0xff]
    %v273 = vld [vmem:[%s266 + $0x30] sm:$0xff]
    %v274 = vld [vmem:[%s266 + $0x38] sm:$0xff]
    %v276 = vsel %vm67, %v262, 0
    %v279 = vsel %vm67, %v263, 0
    %v282 = vsel %vm67, %v264, 0
    %v285 = vsel %vm67, %v265, 0
    %287 = vmatprep.subr.mxu0 0.0
    %288 = vmatpush1.msra.mxu0 %v267
    %289 = vmatprep.subr.mxu0 0.0
    %290 = vmatpush1.msra.mxu0 %v268
    %291 = vmatprep.subr.mxu0 0.0
    %292 = vmatpush1.msra.mxu0 %v269
    %293 = vmatprep.subr.mxu0 0.0
    %294 = vmatpush1.msra.mxu0 %v270
    %295 = vmatprep.subr.mxu0 0.0
    %296 = vmatpush1.msra.mxu0 %v271
    %297 = vmatprep.subr.mxu0 0.0
    %298 = vmatpush1.msra.mxu0 %v272
    %299 = vmatprep.subr.mxu0 0.0
    %300 = vmatpush1.msra.mxu0 %v273
    %301 = vmatprep.subr.mxu0 0.0
    %302 = vmatpush1.msra.mxu0 %v274
    %303 = vmatprep.subr.mxu0 0.0
    %304 = vmatpush1.msra.mxu0 0.0
    %305 = vmatprep.subr.mxu0 0.0
    %306 = vmatpush1.msra.mxu0 0.0
    %307 = vmatprep.subr.mxu0 0.0
    %308 = vmatpush1.msra.mxu0 0.0
    %309 = vmatprep.subr.mxu0 0.0
    %310 = vmatpush1.msra.mxu0 0.0
    %311 = vmatprep.subr.mxu0 0.0
    %312 = vmatpush1.msra.mxu0 0.0
    %313 = vmatprep.subr.mxu0 0.0
    %314 = vmatpush1.msra.mxu0 0.0
    %315 = vmatprep.subr.mxu0 0.0
    %316 = vmatpush1.msra.mxu0 0.0
    %317 = vmatprep.subr.mxu0 0.0
    %318 = vmatpush1.msra.mxu0 0.0
    %319 = vmatprep.subr.mxu0 0.0
    %320 = vmatpush1.msra.mxu0 0.0
    %321 = vmatprep.subr.mxu0 0.0
    %322 = vmatpush1.msra.mxu0 0.0
    %323 = vmatprep.subr.mxu0 0.0
    %324 = vmatpush1.msra.mxu0 0.0
    %325 = vmatprep.subr.mxu0 0.0
    %326 = vmatpush1.msra.mxu0 0.0
    %327 = vmatprep.subr.mxu0 0.0
    %328 = vmatpush1.msra.mxu0 0.0
    %329 = vmatprep.subr.mxu0 0.0
    %330 = vmatpush1.msra.mxu0 0.0
    %331 = vmatprep.subr.mxu0 0.0
    %332 = vmatpush1.msra.mxu0 0.0
    %333 = vmatprep.subr.mxu0 0.0
    %334 = vmatpush1.msra.mxu0 0.0
    %335 = vmatprep.subr.mxu0 0.0
    %336 = vmatpush1.msra.mxu0 0.0
    %337 = vmatprep.subr.mxu0 0.0
    %338 = vmatpush1.msra.mxu0 0.0
    %339 = vmatprep.subr.mxu0 0.0
    %340 = vmatpush1.msra.mxu0 0.0
    %341 = vmatprep.subr.mxu0 0.0
    %342 = vmatpush1.msra.mxu0 0.0
    %343 = vmatprep.subr.mxu0 0.0
    %344 = vmatpush1.msra.mxu0 0.0
    %345 = vmatprep.subr.mxu0 0.0
    %346 = vmatpush1.msra.mxu0 0.0
    %347 = vmatprep.subr.mxu0 0.0
    %348 = vmatpush1.msra.mxu0 0.0
    %349 = vmatprep.subr.mxu0 0.0
    %350 = vmatpush1.msra.mxu0 0.0
    %351 = vmatprep.mubr.f32.mxu0 0.0
    %352 = vmatmul.mubr.f32.gmra.mrb[0].mxu0 %v276
    %v353 = vpop.f32.mrb[0].mxu0
    %v354 = vadd.f32 0.0, %v353
    %v355 = vpop.f32.mrb[0].mxu0
    %356 = vmatprep.mubr.f32.mxu0 0.0
    %357 = vmatmul.mubr.f32.gmra.mrb[0].mxu0 %v279
    %v358 = vpop.f32.mrb[0].mxu0
    %v359 = vadd.f32 0.0, %v358
    %v360 = vpop.f32.mrb[0].mxu0
    %361 = vmatprep.mubr.f32.mxu0 0.0
    %362 = vmatmul.mubr.f32.gmra.mrb[0].mxu0 %v282
    %v363 = vpop.f32.mrb[0].mxu0
    %v364 = vadd.f32 0.0, %v363
    %v365 = vpop.f32.mrb[0].mxu0
    %366 = vmatprep.mubr.f32.mxu0 0.0
    %367 = vmatmul.mubr.f32.gmra.mrb[0].mxu0 %v285
    %v368 = vpop.f32.mrb[0].mxu0
    %v369 = vadd.f32 0.0, %v368
    %v370 = vpop.f32.mrb[0].mxu0
    %371 = vdwg.mxu0
    %v372 = vadd.f32 %v244, %v354
    %v373 = vadd.f32 %v249, %v359
    %v374 = vadd.f32 %v254, %v364
    %v375 = vadd.f32 %v259, %v369
    %v376 = vld [vmem:[%s4] sm:$0x1]
    %v378 = vlaneseq
    %v379 = vshrl.u32 %v378, 7
    %v380 = vsub.s32 0, %v379
    %v381 = vrot.slane %v376, %v380
    %v383 = vadd.f32 %v372, %v381
    %v384 = vadd.f32 %v373, %v381
    %v385 = vadd.f32 %v374, %v381
    %v386 = vadd.f32 %v375, %v381
    %v387 = vadd.f32 %v383, %v384
    %v388 = vadd.f32 %v387, %v385
    %v389 = vadd.f32 %v388, %v386
    %v390 = vrot.slane %v389, 4
    %v391 = vadd.f32 %v389, %v390
    %v392 = vrot.slane %v391, 2
    %v393 = vadd.f32 %v391, %v392
    %v394 = vrot.slane %v393, 1
    %v395 = vadd.f32 %v393, %v394
    %v396 = vmul.f32 %v383, %v383
    %v397 = vmul.f32 %v384, %v384
    %v398 = vmul.f32 %v385, %v385
    %v399 = vmul.f32 %v386, %v386
    %v400 = vadd.f32 %v396, %v397
    %v401 = vadd.f32 %v400, %v398
    %v402 = vadd.f32 %v401, %v399
    %v403 = vrot.slane %v402, 4
    %v404 = vadd.f32 %v402, %v403
    %v405 = vrot.slane %v404, 2
    %v406 = vadd.f32 %v404, %v405
    %v407 = vrot.slane %v406, 1
    %v408 = vadd.f32 %v406, %v407
    %v409 = vld [vmem:[%s10] sm:$0xff]
    %v410 = vld [vmem:[%s10 + $0x8] sm:$0xff]
    %v411 = vld [vmem:[%s10 + $0x10] sm:$0xff]
    %v412 = vld [vmem:[%s10 + $0x18] sm:$0xff]
    %v413 = vld [vmem:[%s10 + $0x20] sm:$0xff]
    %v414 = vld [vmem:[%s10 + $0x28] sm:$0xff]
    %v415 = vld [vmem:[%s10 + $0x30] sm:$0xff]
    %v416 = vld [vmem:[%s10 + $0x38] sm:$0xff]
    %v417 = vld [vmem:[%s10 + $0x40] sm:$0xff]
    %v418 = vld [vmem:[%s10 + $0x48] sm:$0xff]
    %v419 = vld [vmem:[%s10 + $0x50] sm:$0xff]
    %v420 = vld [vmem:[%s10 + $0x58] sm:$0xff]
    %v421 = vld [vmem:[%s10 + $0x60] sm:$0xff]
    %v422 = vld [vmem:[%s10 + $0x68] sm:$0xff]
    %v423 = vld [vmem:[%s10 + $0x70] sm:$0xff]
    %v424 = vld [vmem:[%s10 + $0x78] sm:$0xff]
    %425 = vmatprep.subr.mxu0 0.0
    %426 = vmatpush1.msra.mxu0 %v409
    %427 = vmatprep.subr.mxu0 0.0
    %428 = vmatpush1.msra.mxu0 %v410
    %429 = vmatprep.subr.mxu0 0.0
    %430 = vmatpush1.msra.mxu0 %v411
    %431 = vmatprep.subr.mxu0 0.0
    %432 = vmatpush1.msra.mxu0 %v412
    %433 = vmatprep.subr.mxu0 0.0
    %434 = vmatpush1.msra.mxu0 %v413
    %435 = vmatprep.subr.mxu0 0.0
    %436 = vmatpush1.msra.mxu0 %v414
    %437 = vmatprep.subr.mxu0 0.0
    %438 = vmatpush1.msra.mxu0 %v415
    %439 = vmatprep.subr.mxu0 0.0
    %440 = vmatpush1.msra.mxu0 %v416
    %441 = vmatprep.subr.mxu0 0.0
    %442 = vmatpush1.msra.mxu0 %v417
    %443 = vmatprep.subr.mxu0 0.0
    %444 = vmatpush1.msra.mxu0 %v418
    %445 = vmatprep.subr.mxu0 0.0
    %446 = vmatpush1.msra.mxu0 %v419
    %447 = vmatprep.subr.mxu0 0.0
    %448 = vmatpush1.msra.mxu0 %v420
    %449 = vmatprep.subr.mxu0 0.0
    %450 = vmatpush1.msra.mxu0 %v421
    %451 = vmatprep.subr.mxu0 0.0
    %452 = vmatpush1.msra.mxu0 %v422
    %453 = vmatprep.subr.mxu0 0.0
    %454 = vmatpush1.msra.mxu0 %v423
    %455 = vmatprep.subr.mxu0 0.0
    %456 = vmatpush1.msra.mxu0 %v424
    %457 = vmatprep.subr.mxu0 0.0
    %458 = vmatpush1.msra.mxu0 0.0
    %459 = vmatprep.subr.mxu0 0.0
    %460 = vmatpush1.msra.mxu0 0.0
    %461 = vmatprep.subr.mxu0 0.0
    %462 = vmatpush1.msra.mxu0 0.0
    %463 = vmatprep.subr.mxu0 0.0
    %464 = vmatpush1.msra.mxu0 0.0
    %465 = vmatprep.subr.mxu0 0.0
    %466 = vmatpush1.msra.mxu0 0.0
    %467 = vmatprep.subr.mxu0 0.0
    %468 = vmatpush1.msra.mxu0 0.0
    %469 = vmatprep.subr.mxu0 0.0
    %470 = vmatpush1.msra.mxu0 0.0
    %471 = vmatprep.subr.mxu0 0.0
    %472 = vmatpush1.msra.mxu0 0.0
    %473 = vmatprep.subr.mxu0 0.0
    %474 = vmatpush1.msra.mxu0 0.0
    %475 = vmatprep.subr.mxu0 0.0
    %476 = vmatpush1.msra.mxu0 0.0
    %477 = vmatprep.subr.mxu0 0.0
    %478 = vmatpush1.msra.mxu0 0.0
    %479 = vmatprep.subr.mxu0 0.0
    %480 = vmatpush1.msra.mxu0 0.0
    %481 = vmatprep.subr.mxu0 0.0
    %482 = vmatpush1.msra.mxu0 0.0
    %483 = vmatprep.subr.mxu0 0.0
    %484 = vmatpush1.msra.mxu0 0.0
    %485 = vmatprep.subr.mxu0 0.0
    %486 = vmatpush1.msra.mxu0 0.0
    %487 = vmatprep.subr.mxu0 0.0
    %488 = vmatpush1.msra.mxu0 0.0
    %489 = vmatprep.mubr.f32.mxu0 0.0
    %490 = vmatmul.mubr.f32.gmra.mrb[0].mxu0 %v395
    %v491 = vpop.f32.mrb[0].mxu0
    %v492 = vadd.f32 0.0, %v491
    %v493 = vpop.f32.mrb[0].mxu0
    %494 = vdwg.mxu0
    %495 = vmatprep.subr.mxu0 0.0
    %496 = vmatpush1.msra.mxu0 %v409
    %497 = vmatprep.subr.mxu0 0.0
    %498 = vmatpush1.msra.mxu0 %v410
    %499 = vmatprep.subr.mxu0 0.0
    %500 = vmatpush1.msra.mxu0 %v411
    %501 = vmatprep.subr.mxu0 0.0
    %502 = vmatpush1.msra.mxu0 %v412
    %503 = vmatprep.subr.mxu0 0.0
    %504 = vmatpush1.msra.mxu0 %v413
    %505 = vmatprep.subr.mxu0 0.0
    %506 = vmatpush1.msra.mxu0 %v414
    %507 = vmatprep.subr.mxu0 0.0
    %508 = vmatpush1.msra.mxu0 %v415
    %509 = vmatprep.subr.mxu0 0.0
    %510 = vmatpush1.msra.mxu0 %v416
    %511 = vmatprep.subr.mxu0 0.0
    %512 = vmatpush1.msra.mxu0 %v417
    %513 = vmatprep.subr.mxu0 0.0
    %514 = vmatpush1.msra.mxu0 %v418
    %515 = vmatprep.subr.mxu0 0.0
    %516 = vmatpush1.msra.mxu0 %v419
    %517 = vmatprep.subr.mxu0 0.0
    %518 = vmatpush1.msra.mxu0 %v420
    %519 = vmatprep.subr.mxu0 0.0
    %520 = vmatpush1.msra.mxu0 %v421
    %521 = vmatprep.subr.mxu0 0.0
    %522 = vmatpush1.msra.mxu0 %v422
    %523 = vmatprep.subr.mxu0 0.0
    %524 = vmatpush1.msra.mxu0 %v423
    %525 = vmatprep.subr.mxu0 0.0
    %526 = vmatpush1.msra.mxu0 %v424
    %527 = vmatprep.subr.mxu0 0.0
    %528 = vmatpush1.msra.mxu0 0.0
    %529 = vmatprep.subr.mxu0 0.0
    %530 = vmatpush1.msra.mxu0 0.0
    %531 = vmatprep.subr.mxu0 0.0
    %532 = vmatpush1.msra.mxu0 0.0
    %533 = vmatprep.subr.mxu0 0.0
    %534 = vmatpush1.msra.mxu0 0.0
    %535 = vmatprep.subr.mxu0 0.0
    %536 = vmatpush1.msra.mxu0 0.0
    %537 = vmatprep.subr.mxu0 0.0
    %538 = vmatpush1.msra.mxu0 0.0
    %539 = vmatprep.subr.mxu0 0.0
    %540 = vmatpush1.msra.mxu0 0.0
    %541 = vmatprep.subr.mxu0 0.0
    %542 = vmatpush1.msra.mxu0 0.0
    %543 = vmatprep.subr.mxu0 0.0
    %544 = vmatpush1.msra.mxu0 0.0
    %545 = vmatprep.subr.mxu0 0.0
    %546 = vmatpush1.msra.mxu0 0.0
    %547 = vmatprep.subr.mxu0 0.0
    %548 = vmatpush1.msra.mxu0 0.0
    %549 = vmatprep.subr.mxu0 0.0
    %550 = vmatpush1.msra.mxu0 0.0
    %551 = vmatprep.subr.mxu0 0.0
    %552 = vmatpush1.msra.mxu0 0.0
    %553 = vmatprep.subr.mxu0 0.0
    %554 = vmatpush1.msra.mxu0 0.0
    %555 = vmatprep.subr.mxu0 0.0
    %556 = vmatpush1.msra.mxu0 0.0
    %557 = vmatprep.subr.mxu0 0.0
    %558 = vmatpush1.msra.mxu0 0.0
    %559 = vmatprep.mubr.f32.mxu0 0.0
    %560 = vmatmul.mubr.f32.gmra.mrb[0].mxu0 %v408
    %v561 = vpop.f32.mrb[0].mxu0
    %v562 = vadd.f32 0.0, %v561
    %v563 = vpop.f32.mrb[0].mxu0
    %564 = vdwg.mxu0
    %v565 = vmul.f32 %v492, %v492
    %v566 = vsub.f32 %v562, %v565
    %v567 = vadd.f32 %v566, 1e-05
    %v568 = vrsqrt.pop %v567
    %v569 = vlaneseq
    %v570 = vshrl.u32 %v569, 7
    %v571 = vsub.s32 0, %v570
    %v572 = vrot.slane %v492, %v571
    %v573 = vsub.f32 %v383, %v572
    %v574 = vsub.f32 %v384, %v572
    %v575 = vsub.f32 %v385, %v572
    %v576 = vsub.f32 %v386, %v572
    %v577 = vld [vmem:[%s5] sm:$0x1]
    %v578 = vmul.f32 %v577, %v568
    %v580 = vlaneseq
    %v581 = vshrl.u32 %v580, 7
    %v582 = vsub.s32 0, %v581
    %v583 = vrot.slane %v578, %v582
    %v585 = vmul.f32 %v573, %v583
    %v586 = vmul.f32 %v574, %v583
    %v587 = vmul.f32 %v575, %v583
    %v588 = vmul.f32 %v576, %v583
    %v589 = vld [vmem:[%s6] sm:$0x1]
    %v591 = vlaneseq
    %v592 = vshrl.u32 %v591, 7
    %v593 = vsub.s32 0, %v592
    %v594 = vrot.slane %v589, %v593
    %v596 = vadd.f32 %v585, %v594
    %v597 = vadd.f32 %v586, %v594
    %v598 = vadd.f32 %v587, %v594
    %v599 = vadd.f32 %v588, %v594
    %vm600 = vcmp.gt.f32.partialorder %v596, 0.0
    %vm601 = vcmp.gt.f32.partialorder %v597, 0.0
    %vm602 = vcmp.gt.f32.partialorder %v598, 0.0
    %vm603 = vcmp.gt.f32.partialorder %v599, 0.0
    %v604 = vmin.f32 %v596, 0.0
    %v605 = vmin.f32 %v597, 0.0
    %v606 = vmin.f32 %v598, 0.0
    %v607 = vmin.f32 %v599, 0.0
    %v608 = vmul.f32 %v604, 1.442695
    %v609 = vpow.pop %v608
    %v610 = vmul.f32 %v605, 1.442695
    %v611 = vpow.pop %v610
    %v612 = vmul.f32 %v606, 1.442695
    %v613 = vpow.pop %v612
    %v614 = vmul.f32 %v607, 1.442695
    %v615 = vpow.pop %v614
    %v616 = vsub.f32 %v609, 1.0
    %v617 = vsub.f32 %v611, 1.0
    %v618 = vsub.f32 %v613, 1.0
    %v619 = vsub.f32 %v615, 1.0
    %v620 = vsel %vm600, %v596, %v616
    %v621 = vsel %vm601, %v597, %v617
    %v622 = vsel %vm602, %v598, %v618
    %v623 = vsel %vm603, %v599, %v619
    %624 = vst [vmem:[#allocation2] sm:$0x1] 0.0
    %625 = vst [vmem:[#allocation2 + $0x18] sm:$0x1] 0.0
    %626 = vst [vmem:[#allocation2 + $0x11] sm:$0x1] 0.0
    %627 = vst [vmem:[#allocation2 + $0x29] sm:$0x1] 0.0
    %628 = vst [vmem:[#allocation2 + $0x1] sm:$0xff] %v620
    %629 = vst [vmem:[#allocation2 + $0x9] sm:$0xff] %v621
    %630 = vst [vmem:[#allocation2 + $0x19] sm:$0xff] %v622
    %631 = vst [vmem:[#allocation2 + $0x21] sm:$0xff] %v623
    %v632 = vld [vmem:[#allocation2] sm:$0xff]
    %v633 = vld [vmem:[#allocation2 + $0x8] sm:$0xff]
    %v634 = vld [vmem:[#allocation2 + $0x18] sm:$0xff]
    %v635 = vld [vmem:[#allocation2 + $0x20] sm:$0xff]
    %v636 = vld [vmem:[%s3] sm:$0xff]
    %v637 = vld [vmem:[%s3 + $0x8] sm:$0xff]
    %v638 = vld [vmem:[%s3 + $0x10] sm:$0xff]
    %v639 = vld [vmem:[%s3 + $0x18] sm:$0xff]
    %v640 = vld [vmem:[%s3 + $0x20] sm:$0xff]
    %v641 = vld [vmem:[%s3 + $0x28] sm:$0xff]
    %v642 = vld [vmem:[%s3 + $0x30] sm:$0xff]
    %v643 = vld [vmem:[%s3 + $0x38] sm:$0xff]
    %v644 = vld [vmem:[%s3 + $0x40] sm:$0xff]
    %v645 = vld [vmem:[%s3 + $0x48] sm:$0xff]
    %v646 = vld [vmem:[%s3 + $0x50] sm:$0xff]
    %v647 = vld [vmem:[%s3 + $0x58] sm:$0xff]
    %v648 = vld [vmem:[%s3 + $0x60] sm:$0xff]
    %v649 = vld [vmem:[%s3 + $0x68] sm:$0xff]
    %v650 = vld [vmem:[%s3 + $0x70] sm:$0xff]
    %v651 = vld [vmem:[%s3 + $0x78] sm:$0xff]
    %s652 = scalar_lea.vmem %s3, 128
    %v653 = vld [vmem:[%s652] sm:$0xff]
    %v654 = vld [vmem:[%s652 + $0x8] sm:$0xff]
    %v655 = vld [vmem:[%s652 + $0x10] sm:$0xff]
    %v656 = vld [vmem:[%s652 + $0x18] sm:$0xff]
    %v657 = vld [vmem:[%s652 + $0x20] sm:$0xff]
    %v658 = vld [vmem:[%s652 + $0x28] sm:$0xff]
    %v659 = vld [vmem:[%s652 + $0x30] sm:$0xff]
    %v660 = vld [vmem:[%s652 + $0x38] sm:$0xff]
    %v661 = vld [vmem:[%s652 + $0x40] sm:$0xff]
    %v662 = vld [vmem:[%s652 + $0x48] sm:$0xff]
    %v663 = vld [vmem:[%s652 + $0x50] sm:$0xff]
    %v664 = vld [vmem:[%s652 + $0x58] sm:$0xff]
    %v665 = vld [vmem:[%s652 + $0x60] sm:$0xff]
    %v666 = vld [vmem:[%s652 + $0x68] sm:$0xff]
    %v667 = vld [vmem:[%s652 + $0x70] sm:$0xff]
    %v668 = vld [vmem:[%s652 + $0x78] sm:$0xff]
    %669 = vmatprep.subr.mxu0 0.0
    %670 = vmatpush1.msra.mxu0 %v653
    %671 = vmatprep.subr.mxu0 0.0
    %672 = vmatpush1.msra.mxu0 %v654
    %673 = vmatprep.subr.mxu0 0.0
    %674 = vmatpush1.msra.mxu0 %v655
    %675 = vmatprep.subr.mxu0 0.0
    %676 = vmatpush1.msra.mxu0 %v656
    %677 = vmatprep.subr.mxu0 0.0
    %678 = vmatpush1.msra.mxu0 %v657
    %679 = vmatprep.subr.mxu0 0.0
    %680 = vmatpush1.msra.mxu0 %v658
    %681 = vmatprep.subr.mxu0 0.0
    %682 = vmatpush1.msra.mxu0 %v659
    %683 = vmatprep.subr.mxu0 0.0
    %684 = vmatpush1.msra.mxu0 %v660
    %685 = vmatprep.subr.mxu0 0.0
    %686 = vmatpush1.msra.mxu0 %v661
    %687 = vmatprep.subr.mxu0 0.0
    %688 = vmatpush1.msra.mxu0 %v662
    %689 = vmatprep.subr.mxu0 0.0
    %690 = vmatpush1.msra.mxu0 %v663
    %691 = vmatprep.subr.mxu0 0.0
    %692 = vmatpush1.msra.mxu0 %v664
    %693 = vmatprep.subr.mxu0 0.0
    %694 = vmatpush1.msra.mxu0 %v665
    %695 = vmatprep.subr.mxu0 0.0
    %696 = vmatpush1.msra.mxu0 %v666
    %697 = vmatprep.subr.mxu0 0.0
    %698 = vmatpush1.msra.mxu0 %v667
    %699 = vmatprep.subr.mxu0 0.0
    %700 = vmatpush1.msra.mxu0 %v668
    %701 = vmatprep.subr.mxu0 0.0
    %702 = vmatpush1.msra.mxu0 0.0
    %703 = vmatprep.subr.mxu0 0.0
    %704 = vmatpush1.msra.mxu0 0.0
    %705 = vmatprep.subr.mxu0 0.0
    %706 = vmatpush1.msra.mxu0 0.0
    %707 = vmatprep.subr.mxu0 0.0
    %708 = vmatpush1.msra.mxu0 0.0
    %709 = vmatprep.subr.mxu0 0.0
    %710 = vmatpush1.msra.mxu0 0.0
    %711 = vmatprep.subr.mxu0 0.0
    %712 = vmatpush1.msra.mxu0 0.0
    %713 = vmatprep.subr.mxu0 0.0
    %714 = vmatpush1.msra.mxu0 0.0
    %715 = vmatprep.subr.mxu0 0.0
    %716 = vmatpush1.msra.mxu0 0.0
    %717 = vmatprep.subr.mxu0 0.0
    %718 = vmatpush1.msra.mxu0 0.0
    %719 = vmatprep.subr.mxu0 0.0
    %720 = vmatpush1.msra.mxu0 0.0
    %721 = vmatprep.subr.mxu0 0.0
    %722 = vmatpush1.msra.mxu0 0.0
    %723 = vmatprep.subr.mxu0 0.0
    %724 = vmatpush1.msra.mxu0 0.0
    %725 = vmatprep.subr.mxu0 0.0
    %726 = vmatpush1.msra.mxu0 0.0
    %727 = vmatprep.subr.mxu0 0.0
    %728 = vmatpush1.msra.mxu0 0.0
    %729 = vmatprep.subr.mxu0 0.0
    %730 = vmatpush1.msra.mxu0 0.0
    %731 = vmatprep.subr.mxu0 0.0
    %732 = vmatpush1.msra.mxu0 0.0
    %733 = vmatprep.mubr.f32.mxu0 0.0
    %734 = vmatmul.mubr.f32.gmra.mrb[0].mxu0 %v620
    %v735 = vpop.f32.mrb[0].mxu0
    %v736 = vadd.f32 0.0, %v735
    %v737 = vpop.f32.mrb[0].mxu0
    %738 = vmatprep.mubr.f32.mxu0 0.0
    %739 = vmatmul.mubr.f32.gmra.mrb[0].mxu0 %v621
    %v740 = vpop.f32.mrb[0].mxu0
    %v741 = vadd.f32 0.0, %v740
    %v742 = vpop.f32.mrb[0].mxu0
    %743 = vmatprep.mubr.f32.mxu0 0.0
    %744 = vmatmul.mubr.f32.gmra.mrb[0].mxu0 %v622
    %v745 = vpop.f32.mrb[0].mxu0
    %v746 = vadd.f32 0.0, %v745
    %v747 = vpop.f32.mrb[0].mxu0
    %748 = vmatprep.mubr.f32.mxu0 0.0
    %749 = vmatmul.mubr.f32.gmra.mrb[0].mxu0 %v623
    %v750 = vpop.f32.mrb[0].mxu0
    %v751 = vadd.f32 0.0, %v750
    %v752 = vpop.f32.mrb[0].mxu0
    %753 = vdwg.mxu0
    %754 = vmatprep.subr.mxu0 0.0
    %755 = vmatpush1.msra.mxu0 %v636
    %756 = vmatprep.subr.mxu0 0.0
    %757 = vmatpush1.msra.mxu0 %v637
    %758 = vmatprep.subr.mxu0 0.0
    %759 = vmatpush1.msra.mxu0 %v638
    %760 = vmatprep.subr.mxu0 0.0
    %761 = vmatpush1.msra.mxu0 %v639
    %762 = vmatprep.subr.mxu0 0.0
    %763 = vmatpush1.msra.mxu0 %v640
    %764 = vmatprep.subr.mxu0 0.0
    %765 = vmatpush1.msra.mxu0 %v641
    %766 = vmatprep.subr.mxu0 0.0
    %767 = vmatpush1.msra.mxu0 %v642
    %768 = vmatprep.subr.mxu0 0.0
    %769 = vmatpush1.msra.mxu0 %v643
    %770 = vmatprep.subr.mxu0 0.0
    %771 = vmatpush1.msra.mxu0 %v644
    %772 = vmatprep.subr.mxu0 0.0
    %773 = vmatpush1.msra.mxu0 %v645
    %774 = vmatprep.subr.mxu0 0.0
    %775 = vmatpush1.msra.mxu0 %v646
    %776 = vmatprep.subr.mxu0 0.0
    %777 = vmatpush1.msra.mxu0 %v647
    %778 = vmatprep.subr.mxu0 0.0
    %779 = vmatpush1.msra.mxu0 %v648
    %780 = vmatprep.subr.mxu0 0.0
    %781 = vmatpush1.msra.mxu0 %v649
    %782 = vmatprep.subr.mxu0 0.0
    %783 = vmatpush1.msra.mxu0 %v650
    %784 = vmatprep.subr.mxu0 0.0
    %785 = vmatpush1.msra.mxu0 %v651
    %786 = vmatprep.subr.mxu0 0.0
    %787 = vmatpush1.msra.mxu0 0.0
    %788 = vmatprep.subr.mxu0 0.0
    %789 = vmatpush1.msra.mxu0 0.0
    %790 = vmatprep.subr.mxu0 0.0
    %791 = vmatpush1.msra.mxu0 0.0
    %792 = vmatprep.subr.mxu0 0.0
    %793 = vmatpush1.msra.mxu0 0.0
    %794 = vmatprep.subr.mxu0 0.0
    %795 = vmatpush1.msra.mxu0 0.0
    %796 = vmatprep.subr.mxu0 0.0
    %797 = vmatpush1.msra.mxu0 0.0
    %798 = vmatprep.subr.mxu0 0.0
    %799 = vmatpush1.msra.mxu0 0.0
    %800 = vmatprep.subr.mxu0 0.0
    %801 = vmatpush1.msra.mxu0 0.0
    %802 = vmatprep.subr.mxu0 0.0
    %803 = vmatpush1.msra.mxu0 0.0
    %804 = vmatprep.subr.mxu0 0.0
    %805 = vmatpush1.msra.mxu0 0.0
    %806 = vmatprep.subr.mxu0 0.0
    %807 = vmatpush1.msra.mxu0 0.0
    %808 = vmatprep.subr.mxu0 0.0
    %809 = vmatpush1.msra.mxu0 0.0
    %810 = vmatprep.subr.mxu0 0.0
    %811 = vmatpush1.msra.mxu0 0.0
    %812 = vmatprep.subr.mxu0 0.0
    %813 = vmatpush1.msra.mxu0 0.0
    %814 = vmatprep.subr.mxu0 0.0
    %815 = vmatpush1.msra.mxu0 0.0
    %816 = vmatprep.subr.mxu0 0.0
    %817 = vmatpush1.msra.mxu0 0.0
    %818 = vmatprep.mubr.f32.mxu0 0.0
    %819 = vmatmul.mubr.f32.gmra.mrb[0].mxu0 %v632
    %v820 = vpop.f32.mrb[0].mxu0
    %v821 = vadd.f32 %v736, %v820
    %v822 = vpop.f32.mrb[0].mxu0
    %823 = vmatprep.mubr.f32.mxu0 0.0
    %824 = vmatmul.mubr.f32.gmra.mrb[0].mxu0 %v633
    %v825 = vpop.f32.mrb[0].mxu0
    %v826 = vadd.f32 %v741, %v825
    %v827 = vpop.f32.mrb[0].mxu0
    %828 = vmatprep.mubr.f32.mxu0 0.0
    %829 = vmatmul.mubr.f32.gmra.mrb[0].mxu0 %v634
    %v830 = vpop.f32.mrb[0].mxu0
    %v831 = vadd.f32 %v746, %v830
    %v832 = vpop.f32.mrb[0].mxu0
    %833 = vmatprep.mubr.f32.mxu0 0.0
    %834 = vmatmul.mubr.f32.gmra.mrb[0].mxu0 %v635
    %v835 = vpop.f32.mrb[0].mxu0
    %v836 = vadd.f32 %v751, %v835
    %v837 = vpop.f32.mrb[0].mxu0
    %838 = vdwg.mxu0
    %v839 = vld [vmem:[#allocation2 + $0x2] sm:$0xff]
    %v840 = vld [vmem:[#allocation2 + $0xa] sm:$0xff]
    %v841 = vld [vmem:[#allocation2 + $0x1a] sm:$0xff]
    %v842 = vld [vmem:[#allocation2 + $0x22] sm:$0xff]
    %s843 = scalar_lea.vmem %s3, 256
    %v844 = vld [vmem:[%s843] sm:$0xff]
    %v845 = vld [vmem:[%s843 + $0x8] sm:$0xff]
    %v846 = vld [vmem:[%s843 + $0x10] sm:$0xff]
    %v847 = vld [vmem:[%s843 + $0x18] sm:$0xff]
    %v848 = vld [vmem:[%s843 + $0x20] sm:$0xff]
    %v849 = vld [vmem:[%s843 + $0x28] sm:$0xff]
    %v850 = vld [vmem:[%s843 + $0x30] sm:$0xff]
    %v851 = vld [vmem:[%s843 + $0x38] sm:$0xff]
    %v852 = vld [vmem:[%s843 + $0x40] sm:$0xff]
    %v853 = vld [vmem:[%s843 + $0x48] sm:$0xff]
    %v854 = vld [vmem:[%s843 + $0x50] sm:$0xff]
    %v855 = vld [vmem:[%s843 + $0x58] sm:$0xff]
    %v856 = vld [vmem:[%s843 + $0x60] sm:$0xff]
    %v857 = vld [vmem:[%s843 + $0x68] sm:$0xff]
    %v858 = vld [vmem:[%s843 + $0x70] sm:$0xff]
    %v859 = vld [vmem:[%s843 + $0x78] sm:$0xff]
    %860 = vmatprep.subr.mxu0 0.0
    %861 = vmatpush1.msra.mxu0 %v844
    %862 = vmatprep.subr.mxu0 0.0
    %863 = vmatpush1.msra.mxu0 %v845
    %864 = vmatprep.subr.mxu0 0.0
    %865 = vmatpush1.msra.mxu0 %v846
    %866 = vmatprep.subr.mxu0 0.0
    %867 = vmatpush1.msra.mxu0 %v847
    %868 = vmatprep.subr.mxu0 0.0
    %869 = vmatpush1.msra.mxu0 %v848
    %870 = vmatprep.subr.mxu0 0.0
    %871 = vmatpush1.msra.mxu0 %v849
    %872 = vmatprep.subr.mxu0 0.0
    %873 = vmatpush1.msra.mxu0 %v850
    %874 = vmatprep.subr.mxu0 0.0
    %875 = vmatpush1.msra.mxu0 %v851
    %876 = vmatprep.subr.mxu0 0.0
    %877 = vmatpush1.msra.mxu0 %v852
    %878 = vmatprep.subr.mxu0 0.0
    %879 = vmatpush1.msra.mxu0 %v853
    %880 = vmatprep.subr.mxu0 0.0
    %881 = vmatpush1.msra.mxu0 %v854
    %882 = vmatprep.subr.mxu0 0.0
    %883 = vmatpush1.msra.mxu0 %v855
    %884 = vmatprep.subr.mxu0 0.0
    %885 = vmatpush1.msra.mxu0 %v856
    %886 = vmatprep.subr.mxu0 0.0
    %887 = vmatpush1.msra.mxu0 %v857
    %888 = vmatprep.subr.mxu0 0.0
    %889 = vmatpush1.msra.mxu0 %v858
    %890 = vmatprep.subr.mxu0 0.0
    %891 = vmatpush1.msra.mxu0 %v859
    %892 = vmatprep.subr.mxu0 0.0
    %893 = vmatpush1.msra.mxu0 0.0
    %894 = vmatprep.subr.mxu0 0.0
    %895 = vmatpush1.msra.mxu0 0.0
    %896 = vmatprep.subr.mxu0 0.0
    %897 = vmatpush1.msra.mxu0 0.0
    %898 = vmatprep.subr.mxu0 0.0
    %899 = vmatpush1.msra.mxu0 0.0
    %900 = vmatprep.subr.mxu0 0.0
    %901 = vmatpush1.msra.mxu0 0.0
    %902 = vmatprep.subr.mxu0 0.0
    %903 = vmatpush1.msra.mxu0 0.0
    %904 = vmatprep.subr.mxu0 0.0
    %905 = vmatpush1.msra.mxu0 0.0
    %906 = vmatprep.subr.mxu0 0.0
    %907 = vmatpush1.msra.mxu0 0.0
    %908 = vmatprep.subr.mxu0 0.0
    %909 = vmatpush1.msra.mxu0 0.0
    %910 = vmatprep.subr.mxu0 0.0
    %911 = vmatpush1.msra.mxu0 0.0
    %912 = vmatprep.subr.mxu0 0.0
    %913 = vmatpush1.msra.mxu0 0.0
    %914 = vmatprep.subr.mxu0 0.0
    %915 = vmatpush1.msra.mxu0 0.0
    %916 = vmatprep.subr.mxu0 0.0
    %917 = vmatpush1.msra.mxu0 0.0
    %918 = vmatprep.subr.mxu0 0.0
    %919 = vmatpush1.msra.mxu0 0.0
    %920 = vmatprep.subr.mxu0 0.0
    %921 = vmatpush1.msra.mxu0 0.0
    %922 = vmatprep.subr.mxu0 0.0
    %923 = vmatpush1.msra.mxu0 0.0
    %924 = vmatprep.mubr.f32.mxu0 0.0
    %925 = vmatmul.mubr.f32.gmra.mrb[0].mxu0 %v839
    %v926 = vpop.f32.mrb[0].mxu0
    %v927 = vadd.f32 0.0, %v926
    %v928 = vpop.f32.mrb[0].mxu0
    %929 = vmatprep.mubr.f32.mxu0 0.0
    %930 = vmatmul.mubr.f32.gmra.mrb[0].mxu0 %v840
    %v931 = vpop.f32.mrb[0].mxu0
    %v932 = vadd.f32 0.0, %v931
    %v933 = vpop.f32.mrb[0].mxu0
    %934 = vmatprep.mubr.f32.mxu0 0.0
    %935 = vmatmul.mubr.f32.gmra.mrb[0].mxu0 %v841
    %v936 = vpop.f32.mrb[0].mxu0
    %v937 = vadd.f32 0.0, %v936
    %v938 = vpop.f32.mrb[0].mxu0
    %939 = vmatprep.mubr.f32.mxu0 0.0
    %940 = vmatmul.mubr.f32.gmra.mrb[0].mxu0 %v842
    %v941 = vpop.f32.mrb[0].mxu0
    %v942 = vadd.f32 0.0, %v941
    %v943 = vpop.f32.mrb[0].mxu0
    %944 = vdwg.mxu0
    %v945 = vadd.f32 %v821, %v927
    %v946 = vadd.f32 %v826, %v932
    %v947 = vadd.f32 %v831, %v937
    %v948 = vadd.f32 %v836, %v942
    %v949 = vld [vmem:[%s7] sm:$0x1]
    %v951 = vlaneseq
    %v952 = vshrl.u32 %v951, 7
    %v953 = vsub.s32 0, %v952
    %v954 = vrot.slane %v949, %v953
    %v956 = vadd.f32 %v945, %v954
    %v957 = vadd.f32 %v946, %v954
    %v958 = vadd.f32 %v947, %v954
    %v959 = vadd.f32 %v948, %v954
    %v960 = vsel %vm67, %v956, 0.0
    %v961 = vsel %vm67, %v957, 0.0
    %v962 = vadd.f32 %v960, %v961
    %v963 = vsel %vm67, %v958, 0.0
    %v964 = vadd.f32 %v962, %v963
    %v965 = vsel %vm67, %v959, 0.0
    %v966 = vadd.f32 %v964, %v965
    %v967 = vrot.slane %v966, 4
    %v968 = vadd.f32 %v966, %v967
    %v969 = vrot.slane %v968, 2
    %v970 = vadd.f32 %v968, %v969
    %v971 = vrot.slane %v970, 1
    %v972 = vadd.f32 %v970, %v971
    %v973 = vmul.f32 %v956, %v956
    %v974 = vmul.f32 %v957, %v957
    %v975 = vmul.f32 %v958, %v958
    %v976 = vmul.f32 %v959, %v959
    %v977 = vsel %vm67, %v973, 0.0
    %v978 = vsel %vm67, %v974, 0.0
    %v979 = vadd.f32 %v977, %v978
    %v980 = vsel %vm67, %v975, 0.0
    %v981 = vadd.f32 %v979, %v980
    %v982 = vsel %vm67, %v976, 0.0
    %v983 = vadd.f32 %v981, %v982
    %v984 = vrot.slane %v983, 4
    %v985 = vadd.f32 %v983, %v984
    %v986 = vrot.slane %v985, 2
    %v987 = vadd.f32 %v985, %v986
    %v988 = vrot.slane %v987, 1
    %v989 = vadd.f32 %v987, %v988
    %v990 = vld [vmem:[%s11] sm:$0xff]
    %v991 = vld [vmem:[%s11 + $0x8] sm:$0xff]
    %v992 = vld [vmem:[%s11 + $0x10] sm:$0xff]
    %v993 = vld [vmem:[%s11 + $0x18] sm:$0xff]
    %v994 = vld [vmem:[%s11 + $0x20] sm:$0xff]
    %v995 = vld [vmem:[%s11 + $0x28] sm:$0xff]
    %v996 = vld [vmem:[%s11 + $0x30] sm:$0xff]
    %v997 = vld [vmem:[%s11 + $0x38] sm:$0xff]
    %v999 = vsel %vm67, %v972, 0
    %1001 = vmatprep.subr.mxu0 0.0
    %1002 = vmatpush1.msra.mxu0 %v990
    %1003 = vmatprep.subr.mxu0 0.0
    %1004 = vmatpush1.msra.mxu0 %v991
    %1005 = vmatprep.subr.mxu0 0.0
    %1006 = vmatpush1.msra.mxu0 %v992
    %1007 = vmatprep.subr.mxu0 0.0
    %1008 = vmatpush1.msra.mxu0 %v993
    %1009 = vmatprep.subr.mxu0 0.0
    %1010 = vmatpush1.msra.mxu0 %v994
    %1011 = vmatprep.subr.mxu0 0.0
    %1012 = vmatpush1.msra.mxu0 %v995
    %1013 = vmatprep.subr.mxu0 0.0
    %1014 = vmatpush1.msra.mxu0 %v996
    %1015 = vmatprep.subr.mxu0 0.0
    %1016 = vmatpush1.msra.mxu0 %v997
    %1017 = vmatprep.subr.mxu0 0.0
    %1018 = vmatpush1.msra.mxu0 0.0
    %1019 = vmatprep.subr.mxu0 0.0
    %1020 = vmatpush1.msra.mxu0 0.0
    %1021 = vmatprep.subr.mxu0 0.0
    %1022 = vmatpush1.msra.mxu0 0.0
    %1023 = vmatprep.subr.mxu0 0.0
    %1024 = vmatpush1.msra.mxu0 0.0
    %1025 = vmatprep.subr.mxu0 0.0
    %1026 = vmatpush1.msra.mxu0 0.0
    %1027 = vmatprep.subr.mxu0 0.0
    %1028 = vmatpush1.msra.mxu0 0.0
    %1029 = vmatprep.subr.mxu0 0.0
    %1030 = vmatpush1.msra.mxu0 0.0
    %1031 = vmatprep.subr.mxu0 0.0
    %1032 = vmatpush1.msra.mxu0 0.0
    %1033 = vmatprep.subr.mxu0 0.0
    %1034 = vmatpush1.msra.mxu0 0.0
    %1035 = vmatprep.subr.mxu0 0.0
    %1036 = vmatpush1.msra.mxu0 0.0
    %1037 = vmatprep.subr.mxu0 0.0
    %1038 = vmatpush1.msra.mxu0 0.0
    %1039 = vmatprep.subr.mxu0 0.0
    %1040 = vmatpush1.msra.mxu0 0.0
    %1041 = vmatprep.subr.mxu0 0.0
    %1042 = vmatpush1.msra.mxu0 0.0
    %1043 = vmatprep.subr.mxu0 0.0
    %1044 = vmatpush1.msra.mxu0 0.0
    %1045 = vmatprep.subr.mxu0 0.0
    %1046 = vmatpush1.msra.mxu0 0.0
    %1047 = vmatprep.subr.mxu0 0.0
    %1048 = vmatpush1.msra.mxu0 0.0
    %1049 = vmatprep.subr.mxu0 0.0
    %1050 = vmatpush1.msra.mxu0 0.0
    %1051 = vmatprep.subr.mxu0 0.0
    %1052 = vmatpush1.msra.mxu0 0.0
    %1053 = vmatprep.subr.mxu0 0.0
    %1054 = vmatpush1.msra.mxu0 0.0
    %1055 = vmatprep.subr.mxu0 0.0
    %1056 = vmatpush1.msra.mxu0 0.0
    %1057 = vmatprep.subr.mxu0 0.0
    %1058 = vmatpush1.msra.mxu0 0.0
    %1059 = vmatprep.subr.mxu0 0.0
    %1060 = vmatpush1.msra.mxu0 0.0
    %1061 = vmatprep.subr.mxu0 0.0
    %1062 = vmatpush1.msra.mxu0 0.0
    %1063 = vmatprep.subr.mxu0 0.0
    %1064 = vmatpush1.msra.mxu0 0.0
    %1065 = vmatprep.mubr.f32.mxu0 0.0
    %1066 = vmatmul.mubr.f32.gmra.mrb[0].mxu0 %v999
    %v1067 = vpop.f32.mrb[0].mxu0
    %v1068 = vadd.f32 0.0, %v1067
    %v1069 = vpop.f32.mrb[0].mxu0
    %1070 = vdwg.mxu0
    %v1072 = vsel %vm67, %v989, 0
    %1074 = vmatprep.subr.mxu0 0.0
    %1075 = vmatpush1.msra.mxu0 %v990
    %1076 = vmatprep.subr.mxu0 0.0
    %1077 = vmatpush1.msra.mxu0 %v991
    %1078 = vmatprep.subr.mxu0 0.0
    %1079 = vmatpush1.msra.mxu0 %v992
    %1080 = vmatprep.subr.mxu0 0.0
    %1081 = vmatpush1.msra.mxu0 %v993
    %1082 = vmatprep.subr.mxu0 0.0
    %1083 = vmatpush1.msra.mxu0 %v994
    %1084 = vmatprep.subr.mxu0 0.0
    %1085 = vmatpush1.msra.mxu0 %v995
    %1086 = vmatprep.subr.mxu0 0.0
    %1087 = vmatpush1.msra.mxu0 %v996
    %1088 = vmatprep.subr.mxu0 0.0
    %1089 = vmatpush1.msra.mxu0 %v997
    %1090 = vmatprep.subr.mxu0 0.0
    %1091 = vmatpush1.msra.mxu0 0.0
    %1092 = vmatprep.subr.mxu0 0.0
    %1093 = vmatpush1.msra.mxu0 0.0
    %1094 = vmatprep.subr.mxu0 0.0
    %1095 = vmatpush1.msra.mxu0 0.0
    %1096 = vmatprep.subr.mxu0 0.0
    %1097 = vmatpush1.msra.mxu0 0.0
    %1098 = vmatprep.subr.mxu0 0.0
    %1099 = vmatpush1.msra.mxu0 0.0
    %1100 = vmatprep.subr.mxu0 0.0
    %1101 = vmatpush1.msra.mxu0 0.0
    %1102 = vmatprep.subr.mxu0 0.0
    %1103 = vmatpush1.msra.mxu0 0.0
    %1104 = vmatprep.subr.mxu0 0.0
    %1105 = vmatpush1.msra.mxu0 0.0
    %1106 = vmatprep.subr.mxu0 0.0
    %1107 = vmatpush1.msra.mxu0 0.0
    %1108 = vmatprep.subr.mxu0 0.0
    %1109 = vmatpush1.msra.mxu0 0.0
    %1110 = vmatprep.subr.mxu0 0.0
    %1111 = vmatpush1.msra.mxu0 0.0
    %1112 = vmatprep.subr.mxu0 0.0
    %1113 = vmatpush1.msra.mxu0 0.0
    %1114 = vmatprep.subr.mxu0 0.0
    %1115 = vmatpush1.msra.mxu0 0.0
    %1116 = vmatprep.subr.mxu0 0.0
    %1117 = vmatpush1.msra.mxu0 0.0
    %1118 = vmatprep.subr.mxu0 0.0
    %1119 = vmatpush1.msra.mxu0 0.0
    %1120 = vmatprep.subr.mxu0 0.0
    %1121 = vmatpush1.msra.mxu0 0.0
    %1122 = vmatprep.subr.mxu0 0.0
    %1123 = vmatpush1.msra.mxu0 0.0
    %1124 = vmatprep.subr.mxu0 0.0
    %1125 = vmatpush1.msra.mxu0 0.0
    %1126 = vmatprep.subr.mxu0 0.0
    %1127 = vmatpush1.msra.mxu0 0.0
    %1128 = vmatprep.subr.mxu0 0.0
    %1129 = vmatpush1.msra.mxu0 0.0
    %1130 = vmatprep.subr.mxu0 0.0
    %1131 = vmatpush1.msra.mxu0 0.0
    %1132 = vmatprep.subr.mxu0 0.0
    %1133 = vmatpush1.msra.mxu0 0.0
    %1134 = vmatprep.subr.mxu0 0.0
    %1135 = vmatpush1.msra.mxu0 0.0
    %1136 = vmatprep.subr.mxu0 0.0
    %1137 = vmatpush1.msra.mxu0 0.0
    %1138 = vmatprep.mubr.f32.mxu0 0.0
    %1139 = vmatmul.mubr.f32.gmra.mrb[0].mxu0 %v1072
    %v1140 = vpop.f32.mrb[0].mxu0
    %v1141 = vadd.f32 0.0, %v1140
    %v1142 = vpop.f32.mrb[0].mxu0
    %1143 = vdwg.mxu0
    %v1144 = vmul.f32 %v1068, %v1068
    %v1145 = vsub.f32 %v1141, %v1144
    %v1146 = vadd.f32 %v1145, 1e-05
    %v1147 = vrsqrt.pop %v1146
    %v1148 = vlaneseq
    %v1149 = vshrl.u32 %v1148, 7
    %v1150 = vsub.s32 0, %v1149
    %v1151 = vrot.slane %v1068, %v1150
    %v1152 = vsub.f32 %v956, %v1151
    %v1153 = vsub.f32 %v957, %v1151
    %v1154 = vsub.f32 %v958, %v1151
    %v1155 = vsub.f32 %v959, %v1151
    %v1156 = vld [vmem:[%s8] sm:$0x1]
    %v1157 = vmul.f32 %v1156, %v1147
    %v1159 = vlaneseq
    %v1160 = vshrl.u32 %v1159, 7
    %v1161 = vsub.s32 0, %v1160
    %v1162 = vrot.slane %v1157, %v1161
    %v1164 = vmul.f32 %v1152, %v1162
    %v1165 = vmul.f32 %v1153, %v1162
    %v1166 = vmul.f32 %v1154, %v1162
    %v1167 = vmul.f32 %v1155, %v1162
    %v1168 = vld [vmem:[%s9] sm:$0x1]
    %v1170 = vlaneseq
    %v1171 = vshrl.u32 %v1170, 7
    %v1172 = vsub.s32 0, %v1171
    %v1173 = vrot.slane %v1168, %v1172
    %v1175 = vadd.f32 %v1164, %v1173
    %v1176 = vadd.f32 %v1165, %v1173
    %v1177 = vadd.f32 %v1166, %v1173
    %v1178 = vadd.f32 %v1167, %v1173
    %v1179 = vld [vmem:[%s1] sm:$0xff]
    %v1180 = vld [vmem:[%s1 + $0x8] sm:$0xff]
    %v1181 = vld [vmem:[%s1 + $0x10] sm:$0xff]
    %v1182 = vld [vmem:[%s1 + $0x18] sm:$0xff]
    %v1183 = vadd.f32 %v1175, %v1179
    %v1184 = vadd.f32 %v1176, %v1180
    %v1185 = vadd.f32 %v1177, %v1181
    %v1186 = vadd.f32 %v1178, %v1182
    %vm1187 = vcmp.gt.f32.partialorder %v1183, 0.0
    %vm1188 = vcmp.gt.f32.partialorder %v1184, 0.0
    %vm1189 = vcmp.gt.f32.partialorder %v1185, 0.0
    %vm1190 = vcmp.gt.f32.partialorder %v1186, 0.0
    %v1191 = vmin.f32 %v1183, 0.0
    %v1192 = vmin.f32 %v1184, 0.0
    %v1193 = vmin.f32 %v1185, 0.0
    %v1194 = vmin.f32 %v1186, 0.0
    %v1195 = vmul.f32 %v1191, 1.442695
    %v1196 = vpow.pop %v1195
    %v1197 = vmul.f32 %v1192, 1.442695
    %v1198 = vpow.pop %v1197
    %v1199 = vmul.f32 %v1193, 1.442695
    %v1200 = vpow.pop %v1199
    %v1201 = vmul.f32 %v1194, 1.442695
    %v1202 = vpow.pop %v1201
    %v1203 = vsub.f32 %v1196, 1.0
    %v1204 = vsub.f32 %v1198, 1.0
    %v1205 = vsub.f32 %v1200, 1.0
    %v1206 = vsub.f32 %v1202, 1.0
    %v1207 = vsel %vm1187, %v1183, %v1203
    %v1208 = vsel %vm1188, %v1184, %v1204
    %v1209 = vsel %vm1189, %v1185, %v1205
    %v1210 = vsel %vm1190, %v1186, %v1206
    %1211 = vst.msk [vmem:[#allocation3] sm:$0xff] %vm67, %v1207
    %1212 = vst.msk [vmem:[#allocation3 + $0x8] sm:$0xff] %vm67, %v1208
    %1213 = vst.msk [vmem:[#allocation3 + $0x10] sm:$0xff] %vm67, %v1209
    %1214 = vst.msk [vmem:[#allocation3 + $0x18] sm:$0xff] %vm67, %v1210
    // Predicated region
    $region50: #{tpu_custom_call.1} parent=1 // pred_check
      _
    $region51: #{tpu_custom_call.1} parent=1 // pred_check_branch
      %1216 = sbr.rel (0) target = $region53
    $region52: #{tpu_custom_call.1} parent=1 // pred_region
      %s1218 = ssub.s32 512, 512
      %1219 = vsyncadd [#allocation4], %s1218
      %s1220 = sshll.u32 [#allocation3], 4
      %s1221 = int_to_ptr.vmem [resolvable:$true] %s1220
      %1226 = dma.vmem_to_hbm [thread:$0]  %s1221, 512, %s12, [#allocation4], 128, 128, 8
    $region53: #{tpu_custom_call.1} parent=1 // pred_fallthru
      _
    // Predicated region
    $region54: #{tpu_custom_call.1} parent=1 // pred_check
      _
    $region55: #{tpu_custom_call.1} parent=1 // pred_check_branch
      %1228 = sbr.rel (0) target = $region57
    $region56: #{tpu_custom_call.1} parent=1 // pred_region
      %1229 = dma.done [#allocation4], 512
    $region57: #{tpu_custom_call.1} parent=1 // pred_fallthru
      _
    %1230 = vsyncpa [#allocation4], 1

</llo_original>
